<compile_context>
chip_gen: v5e
topology: v5e:2x2
jax: 0.10.0
libtpu: 0.0.40
codegen_flags: <defaults>
</compile_context>

<pallas_src>
import functools

import jax
import jax.numpy as jnp
from jax.experimental import pallas as pl
from jax.experimental.pallas import tpu as pltpu

EPS = 1e-6


# ----------------------------- in-kernel helpers -----------------------------

def _layernorm(x, gamma, beta):
    # LayerNorm over last dim, eps=1e-6, biased variance (matches nn.LayerNorm).
    mu = jnp.mean(x, axis=-1, keepdims=True)
    xc = x - mu
    var = jnp.mean(xc * xc, axis=-1, keepdims=True)
    return xc * jax.lax.rsqrt(var + EPS) * gamma + beta


def _gelu(x):
    return jax.nn.gelu(x, approximate=True)


# Head split/merge.  Preferred path: one reshape + one (0,2,1,3) transpose per
# tensor (no per-head lane slicing).  Fallback path (probed): the original
# slice/stack formulation, known to lower on every Pallas build.

def _split_heads_transpose(t, Bt, N, H, Dh):        # (Bt*N, D) -> (Bt*H, N, Dh)
    return t.reshape(Bt, N, H, Dh).swapaxes(1, 2).reshape(Bt * H, N, Dh)


def _merge_heads_transpose(o3, Bt, N, H, Dh):       # (Bt*H, N, Dh) -> (Bt*N, D)
    return o3.reshape(Bt, H, N, Dh).swapaxes(1, 2).reshape(Bt * N, H * Dh)


def _split_heads_stack(t, Bt, N, H, Dh):            # batch index = h*Bt + b
    t3 = t.reshape(Bt, N, H * Dh)
    return jnp.stack([t3[:, :, h * Dh:(h + 1) * Dh] for h in range(H)],
                     axis=0).reshape(H * Bt, N, Dh)


def _merge_heads_stack(o3, Bt, N, H, Dh):
    o4 = o3.reshape(H, Bt, N, Dh)
    return jnp.concatenate([o4[h] for h in range(H)],
                           axis=-1).reshape(Bt * N, H * Dh)


# --------------------------------- kernel ------------------------------------

def block_kernel(*refs, num_heads, add_pos, final_ln, use_transpose):
    it = iter(refs)
    x_ref = next(it)
    pos_ref = next(it) if add_pos else None
    ln1_g, ln1_b = next(it), next(it)
    q_w, q_b = next(it), next(it)
    k_w, k_b = next(it), next(it)
    v_w, v_b = next(it), next(it)
    proj_w, proj_b = next(it), next(it)
    ln2_g, ln2_b = next(it), next(it)
    fc1_w, fc1_b = next(it), next(it)
    fc2_w, fc2_b = next(it), next(it)
    nrm_g, nrm_b = (next(it), next(it)) if final_ln else (None, None)
    o_ref = next(it)

    Bt, N, D = x_ref.shape
    H = num_heads
    Dh = D // H
    M = Bt * N
    split = _split_heads_transpose if use_transpose else _split_heads_stack
    merge = _merge_heads_transpose if use_transpose else _merge_heads_stack

    xf = x_ref[...].astype(jnp.float32)                 # (Bt, N, D) f32
    if add_pos:
        xf = xf + pos_ref[...]                          # fused pos_embed add
    x = xf.reshape(M, D)                                # residual stream (f32)

    # ---- attention branch:  x + Proj(MHSA(LN1(x))) ----
    xn = _layernorm(x, ln1_g[...], ln1_b[...]).astype(jnp.bfloat16)
    # attention scale is pre-folded into q_w / q_b (to_kernel_params)
    q = jnp.dot(xn, q_w[...], preferred_element_type=jnp.float32) + q_b[...]
    k = jnp.dot(xn, k_w[...], preferred_element_type=jnp.float32) + k_b[...]
    v = jnp.dot(xn, v_w[...], preferred_element_type=jnp.float32) + v_b[...]

    q3 = split(q, Bt, N, H, Dh).astype(jnp.bfloat16)    # (Bt*H, N, Dh)
    k3 = split(k, Bt, N, H, Dh).astype(jnp.bfloat16)
    v3 = split(v, Bt, N, H, Dh).astype(jnp.bfloat16)

    s = jax.lax.dot_general(                            # (Bt*H, N, N) f32
        q3, k3, dimension_numbers=(((2,), (2,)), ((0,), (0,))),
        preferred_element_type=jnp.float32)
    s = s - jnp.max(s, axis=-1, keepdims=True)          # f32 softmax
    p = jnp.exp(s)
    p = p * pl.reciprocal(jnp.sum(p, axis=-1, keepdims=True), approx=True)

    o3 = jax.lax.dot_general(                           # (Bt*H, N, Dh) f32
        p.astype(jnp.bfloat16), v3,
        dimension_numbers=(((2,), (1,)), ((0,), (0,))),
        preferred_element_type=jnp.float32)
    o = merge(o3, Bt, N, H, Dh)                         # (M, D) f32, no lane concat loop

    attn = jnp.dot(o.astype(jnp.bfloat16), proj_w[...],
                   preferred_element_type=jnp.float32) + proj_b[...]
    x = x + attn

    # ---- MLP branch:  x + FC2(GELU(FC1(LN2(x)))) ----
    xn2 = _layernorm(x, ln2_g[...], ln2_b[...]).astype(jnp.bfloat16)
    h1 = jnp.dot(xn2, fc1_w[...], preferred_element_type=jnp.float32) + fc1_b[...]
    h1 = _gelu(h1)                                      # f32 GELU
    h2 = jnp.dot(h1.astype(jnp.bfloat16), fc2_w[...],
                 preferred_element_type=jnp.float32) + fc2_b[...]
    x = x + h2

    if final_ln:
        x = _layernorm(x, nrm_g[...], nrm_b[...])       # fused final LN
    o_ref[...] = x.reshape(Bt, N, D).astype(o_ref.dtype)


# ------------------------------ feature probes --------------------------------

@functools.lru_cache(maxsize=1)
def _single_buffer_supported():
    """Probe pl.Buffered(buffer_count=1) on constant operands with a tiny call."""
    def k(x_ref, w_ref, o_ref):
        o_ref[...] = x_ref[...] + w_ref[...]
    try:
        x = jnp.zeros((2, 8, 128), jnp.float32)
        w = jnp.ones((8, 128), jnp.float32)
        out = pl.pallas_call(
            k, out_shape=jax.ShapeDtypeStruct((2, 8, 128), jnp.float32),
            grid=(2,),
            in_specs=[pl.BlockSpec((1, 8, 128), lambda b: (b, 0, 0)),
                      pl.BlockSpec((8, 128), lambda b: (0, 0),
                                   pipeline_mode=pl.Buffered(buffer_count=1))],
            out_specs=pl.BlockSpec((1, 8, 128), lambda b: (b, 0, 0)),
        )(x, w)
        out = jax.block_until_ready(out)
        return bool(jnp.allclose(out, x + w))
    except Exception:
        return False


@functools.lru_cache(maxsize=None)
def _transpose_split_supported(Bt, N, H, Dh):
    """Probe the reshape+swapaxes head split/merge (round-trip identity)."""
    D = H * Dh
    def k(x_ref, o_ref):
        t = _split_heads_transpose(x_ref[...].reshape(Bt * N, D), Bt, N, H, Dh)
        o_ref[...] = _merge_heads_transpose(t, Bt, N, H, Dh).reshape(Bt, N, D)
    try:
        x = jnp.arange(Bt * N * D, dtype=jnp.float32).reshape(Bt, N, D)
        out = jax.block_until_ready(pl.pallas_call(
            k, out_shape=jax.ShapeDtypeStruct((Bt, N, D), jnp.float32))(x))
        return bool(jnp.array_equal(out, x))
    except Exception:
        return False


# ------------------------------ pallas wrapper --------------------------------

def _vmem_capacity_bytes():
    try:
        cap = getattr(pltpu.get_tpu_info(), "vmem_capacity_bytes", None)
        if cap:
            return int(cap)
    except Exception:
        pass
    return 64 << 20   # conservative (v7x per-TC) if the query is unavailable


def _vmem_limit_bytes(Bt, N, D, Hd, H, weights_double_buffered):
    M = Bt * N
    wmul = 2 if weights_double_buffered else 1
    weights = wmul * 2 * (4 * D * D + 2 * D * Hd)          # bf16 Wq,Wk,Wv,Wproj,FC1,FC2
    smalls = wmul * 4 * (10 * D + Hd + N * D)              # f32 biases / LN / pos_embed
    io = 2 * 2 * M * D * 4                                 # in+out act tiles, double-buffered
    acts = 4 * M * (10 * D + 2 * Hd) + 4 * 3 * Bt * H * N * N
    need = weights + smalls + io + acts
    cap = int(0.9 * _vmem_capacity_bytes())                # headroom for Mosaic scratch
    return int(min(max(int(1.3 * need), 32 << 20), cap))


def _pick_block_batch(B, N, D, H, Hd):
    """Batch elements folded per grid step so the GEMM M-dim (Bt*N) fills the MXU."""
    target_rows = 256
    score_bytes = 2 * H * N * N * 4
    act_bytes = N * (10 * D + 2 * Hd) * 4
    max_bt = max(1, (12 << 20) // max(1, score_bytes + act_bytes))
    divisors = [d for d in range(1, B + 1) if B % d == 0 and d <= max_bt] or [1]
    meets = [d for d in divisors if d * N >= target_rows]
    if meets:
        even = [d for d in meets if (B // d) % 2 == 0]     # keep both v7x TCs busy
        return min(even) if even else min(meets)
    return max(divisors)


def run_block(x, p, num_heads, *, pos_embed=None, final_norm=None, out_dtype=None):
    B, N, D = x.shape
    Hd = int(p["fc1_w"].shape[1])
    Dh = D // num_heads
    add_pos = pos_embed is not None
    final_ln = final_norm is not None
    out_dtype = jnp.dtype(out_dtype or x.dtype)
    Bt = _pick_block_batch(B, N, D, num_heads, Hd)

    const_args = []
    if add_pos:
        const_args.append(pos_embed)
    const_args += [p["ln1_g"], p["ln1_b"],
                   p["q_w"], p["q_b"], p["k_w"], p["k_b"], p["v_w"], p["v_b"],
                   p["proj_w"], p["proj_b"], p["ln2_g"], p["ln2_b"],
                   p["fc1_w"], p["fc1_b"], p["fc2_w"], p["fc2_b"]]
    if final_ln:
        const_args += [final_norm[0], final_norm[1]]

    single = _single_buffer_supported()
    use_transpose = _transpose_split_supported(Bt, N, num_heads, Dh)

    kern = functools.partial(block_kernel, num_heads=num_heads, add_pos=add_pos,
                             final_ln=final_ln, use_transpose=use_transpose)

    def cspec(arr):
        idx = lambda b, _n=arr.ndim: (0,) * _n
        if single:
            # Constant across the grid -> one VMEM buffer is enough.
            return pl.BlockSpec(arr.shape, idx,
                                pipeline_mode=pl.Buffered(buffer_count=1))
        return pl.BlockSpec(arr.shape, idx)

    flops = 2 * B * N * D * (4 * D + 2 * Hd) + 4 * B * N * N * D
    transcendentals = B * num_heads * N * N + 2 * B * N * Hd
    bytes_weights = sum(int(a.size) * a.dtype.itemsize for a in const_args)
    bytes_acc = (bytes_weights + int(x.size) * x.dtype.itemsize
                 + B * N * D * out_dtype.itemsize)

    return pl.pallas_call(
        kern,
        out_shape=jax.ShapeDtypeStruct((B, N, D), out_dtype),
        grid=(B // Bt,),
        in_specs=[pl.BlockSpec((Bt, N, D), lambda b: (b, 0, 0))]
                 + [cspec(a) for a in const_args],
        out_specs=pl.BlockSpec((Bt, N, D), lambda b: (b, 0, 0)),
        compiler_params=pltpu.CompilerParams(
            dimension_semantics=("parallel",),
            vmem_limit_bytes=_vmem_limit_bytes(
                Bt, N, D, Hd, num_heads, weights_double_buffered=not single)),
        cost_estimate=pl.CostEstimate(flops=int(flops),
                                      transcendentals=int(transcendentals),
                                      bytes_accessed=int(bytes_acc)),
    )(x, *const_args)


def attention_encoder_forward(x, params, num_heads, act_dtype=jnp.bfloat16):
    """x: (B, N, D).  Residual stream is carried in bf16 between blocks."""
    blocks = params["blocks"]
    assert len(blocks) >= 1
    last = len(blocks) - 1
    out_dtype = x.dtype
    for i, blk in enumerate(blocks):
        x = run_block(
            x, blk, num_heads,
            pos_embed=params["pos_embed"] if i == 0 else None,
            final_norm=(params["norm_g"], params["norm_b"]) if i == last else None,
            out_dtype=(out_dtype if i == last else act_dtype))
    return x  # head: nn.Identity (head_dim=0)


# ---------------------------- params & reference ------------------------------

def init_params(key, seq_length, embed_dim, depth, num_heads, mlp_ratio=4.0):
    hidden = int(embed_dim * mlp_ratio)
    k_pos, key = jax.random.split(key)
    params = {
        "pos_embed": 0.02 * jax.random.truncated_normal(
            k_pos, -2.0, 2.0, (1, seq_length, embed_dim), jnp.float32),
        "norm_g": jnp.ones((1, embed_dim), jnp.float32),
        "norm_b": jnp.zeros((1, embed_dim), jnp.float32),
        "blocks": [],
    }
    for _ in range(depth):
        key, k1, k2, k3, k4 = jax.random.split(key, 5)
        params["blocks"].append({
            "ln1_g": jnp.ones((1, embed_dim), jnp.float32),
            "ln1_b": jnp.zeros((1, embed_dim), jnp.float32),
            "qkv_w": 0.02 * jax.random.normal(k1, (embed_dim, 3 * embed_dim), jnp.float32),
            "qkv_b": jnp.zeros((1, 3 * embed_dim), jnp.float32),
            "proj_w": 0.02 * jax.random.normal(k2, (embed_dim, embed_dim), jnp.float32),
            "proj_b": jnp.zeros((1, embed_dim), jnp.float32),
            "ln2_g": jnp.ones((1, embed_dim), jnp.float32),
            "ln2_b": jnp.zeros((1, embed_dim), jnp.float32),
            "fc1_w": 0.02 * jax.random.normal(k3, (embed_dim, hidden), jnp.float32),
            "fc1_b": jnp.zeros((1, hidden), jnp.float32),
            "fc2_w": 0.02 * jax.random.normal(k4, (hidden, embed_dim), jnp.float32),
            "fc2_b": jnp.zeros((1, embed_dim), jnp.float32),
        })
    return params


def to_kernel_params(params, num_heads):
    """Split QKV into head-order Q/K/V weights, fold the attention scale into Q,
    and store all matmul weights in bf16 (MXU operands)."""
    def conv_block(blk):
        D = blk["qkv_w"].shape[0]
        scale = (D // num_heads) ** -0.5
        qkv_w, qkv_b = blk["qkv_w"], blk["qkv_b"]
        return {
            "ln1_g": blk["ln1_g"], "ln1_b": blk["ln1_b"],
            "ln2_g": blk["ln2_g"], "ln2_b": blk["ln2_b"],
            "q_w": (qkv_w[:, 0:D] * scale).astype(jnp.bfloat16),
            "q_b": qkv_b[:, 0:D] * scale,
            "k_w": qkv_w[:, D:2 * D].astype(jnp.bfloat16),
            "k_b": qkv_b[:, D:2 * D],
            "v_w": qkv_w[:, 2 * D:3 * D].astype(jnp.bfloat16),
            "v_b": qkv_b[:, 2 * D:3 * D],
            "proj_w": blk["proj_w"].astype(jnp.bfloat16),
            "proj_b": blk["proj_b"],
            "fc1_w": blk["fc1_w"].astype(jnp.bfloat16),
            "fc1_b": blk["fc1_b"],
            "fc2_w": blk["fc2_w"].astype(jnp.bfloat16),
            "fc2_b": blk["fc2_b"],
        }
    return {"pos_embed": params["pos_embed"],
            "norm_g": params["norm_g"], "norm_b": params["norm_b"],
            "blocks": [conv_block(b) for b in params["blocks"]]}


def _ref_ln(x, g, b):
    mu = jnp.mean(x, axis=-1, keepdims=True)
    var = jnp.mean((x - mu) ** 2, axis=-1, keepdims=True)
    return (x - mu) * jax.lax.rsqrt(var + EPS) * g + b


def ref_forward(x, params, num_heads):
    x = x + params["pos_embed"]
    B, N, D = x.shape
    Dh = D // num_heads
    for p in params["blocks"]:
        xn = _ref_ln(x, p["ln1_g"][0], p["ln1_b"][0])
        qkv = xn @ p["qkv_w"] + p["qkv_b"][0]
        qkv = qkv.reshape(B, N, 3, num_heads, Dh).transpose(2, 0, 3, 1, 4)
        q, k, v = qkv[0], qkv[1], qkv[2]
        attn = (q @ jnp.swapaxes(k, -2, -1)) * (Dh ** -0.5)
        attn = jax.nn.softmax(attn, axis=-1)
        o = (attn @ v).transpose(0, 2, 1, 3).reshape(B, N, D)
        x = x + (o @ p["proj_w"] + p["proj_b"][0])
        xn2 = _ref_ln(x, p["ln2_g"][0], p["ln2_b"][0])
        h = _gelu(xn2 @ p["fc1_w"] + p["fc1_b"][0])
        x = x + (h @ p["fc2_w"] + p["fc2_b"][0])
    return _ref_ln(x, params["norm_g"][0], params["norm_b"][0])


# ----------------------------------- main -------------------------------------

if __name__ == "__main__":
    B, SEQ, DIM, DEPTH, HEADS = 2, 8, 128, 2, 4   # small shapes; DIM % HEADS == 0
    key = jax.random.PRNGKey(0)
    kx, kp = jax.random.split(key)
    x = jax.random.normal(kx, (B, SEQ, DIM), jnp.float32)
    params = init_params(kp, SEQ, DIM, DEPTH, HEADS)
    kparams = to_kernel_params(params, HEADS)

    out = attention_encoder_forward(x, kparams, HEADS)
    out = jax.block_until_ready(out)

    ref = ref_forward(x, params, HEADS)                 # f32 reference
    assert out.shape == (B, SEQ, DIM) and out.dtype == x.dtype
    # Tolerance covers bf16-stored weights, bf16 MXU operands, the bf16
    # inter-block residual stream and the approx-reciprocal softmax denominator
    # (LN / softmax / GELU / accumulation stay f32).
    max_err = float(jnp.max(jnp.abs(out - ref)))
    assert max_err < 5e-2, f"max_err={max_err}"
    print("KERNEL_OK")
</pallas_src>

<mosaic_0001>
module attributes {stable_mosaic.version = 11 : i64} {
  func.func @k(%arg0: i32, %arg1: memref<1x8x128xf32, #tpu.memory_space<vmem>>, %arg2: memref<8x128xf32, #tpu.memory_space<vmem>>, %arg3: memref<1x8x128xf32, #tpu.memory_space<vmem>>) attributes {dimension_semantics = [#tpu.dimension_semantics<arbitrary>], iteration_bounds = array<i64: 2>, scalar_prefetch = 0 : i64, scratch_operands = 0 : i64, tpu.core_type = #tpu.core_type<tc>, window_params = [{transform_indices = @transform_0, window_bounds = array<i64: 1, 8, 128>}, {pipeline_mode = #tpu.pipeline_mode<synchronous>, transform_indices = @transform_1, window_bounds = array<i64: 8, 128>}, {transform_indices = @transform_2, window_bounds = array<i64: 1, 8, 128>}]} {
    %c0 = arith.constant 0 : index
    %c0_0 = arith.constant 0 : index
    %c0_1 = arith.constant 0 : index
    %0 = vector.load %arg1[%c0, %c0_0, %c0_1] : memref<1x8x128xf32, #tpu.memory_space<vmem>>, vector<1x8x128xf32>
    %c0_2 = arith.constant 0 : index
    %c0_3 = arith.constant 0 : index
    %1 = vector.load %arg2[%c0_2, %c0_3] : memref<8x128xf32, #tpu.memory_space<vmem>>, vector<8x128xf32>
    %2 = vector.shape_cast %1 : vector<8x128xf32> to vector<1x8x128xf32>
    %3 = arith.addf %0, %2 : vector<1x8x128xf32>
    %c0_4 = arith.constant 0 : index
    %c0_5 = arith.constant 0 : index
    %c0_6 = arith.constant 0 : index
    %4 = vector.load %arg3[%c0_4, %c0_5, %c0_6] : memref<1x8x128xf32, #tpu.memory_space<vmem>>, vector<1x8x128xf32>
    tpu.vector_store %arg3[%c0_4, %c0_5, %c0_6], %3 {strides = array<i32>} : memref<1x8x128xf32, #tpu.memory_space<vmem>>, vector<1x8x128xf32>,
    return
  }
  func.func @transform_0(%arg0: i32) -> (i32, i32, i32) {
    %c0_i32 = arith.constant 0 : i32
    %c0_i32_0 = arith.constant 0 : i32
    %c0_i32_1 = arith.constant 0 : i32
    return %arg0, %c0_i32, %c0_i32_0 : i32, i32, i32
  }
  func.func @transform_1(%arg0: i32) -> (i32, i32) {
    %c0_i32 = arith.constant 0 : i32
    %c0_i32_0 = arith.constant 0 : i32
    %c0_i32_1 = arith.constant 0 : i32
    return %c0_i32, %c0_i32_0 : i32, i32
  }
  func.func @transform_2(%arg0: i32) -> (i32, i32, i32) {
    %c0_i32 = arith.constant 0 : i32
    %c0_i32_0 = arith.constant 0 : i32
    %c0_i32_1 = arith.constant 0 : i32
    return %arg0, %c0_i32, %c0_i32_0 : i32, i32, i32
  }
}

module attributes {stable_mosaic.version = 11 : i64} {
  func.func @k(%arg0: memref<2x8x128xf32, #tpu.memory_space<vmem>>, %arg1: memref<2x8x128xf32, #tpu.memory_space<vmem>>) attributes {dimension_semantics = [], scalar_prefetch = 0 : i64, scratch_operands = 0 : i64, tpu.core_type = #tpu.core_type<tc>} {
    %c0 = arith.constant 0 : index
    %c0_0 = arith.constant 0 : index
    %c0_1 = arith.constant 0 : index
    %0 = vector.load %arg0[%c0, %c0_0, %c0_1] : memref<2x8x128xf32, #tpu.memory_space<vmem>>, vector<2x8x128xf32>
    %1 = vector.shape_cast %0 : vector<2x8x128xf32> to vector<16x128xf32>
    %2 = vector.shape_cast %1 : vector<16x128xf32> to vector<2x8x4x32xf32>
    %3 = tpu.transpose %2, [0, 2, 1, 3] : vector<2x8x4x32xf32> -> vector<2x4x8x32xf32>
    %4 = vector.shape_cast %3 : vector<2x4x8x32xf32> to vector<8x8x32xf32>
    %5 = vector.shape_cast %4 : vector<8x8x32xf32> to vector<2x4x8x32xf32>
    %6 = tpu.transpose %5, [0, 2, 1, 3] : vector<2x4x8x32xf32> -> vector<2x8x4x32xf32>
    %7 = vector.shape_cast %6 : vector<2x8x4x32xf32> to vector<16x128xf32>
    %8 = vector.shape_cast %7 : vector<16x128xf32> to vector<2x8x128xf32>
    %c0_2 = arith.constant 0 : index
    %c0_3 = arith.constant 0 : index
    %c0_4 = arith.constant 0 : index
    %9 = vector.load %arg1[%c0_2, %c0_3, %c0_4] : memref<2x8x128xf32, #tpu.memory_space<vmem>>, vector<2x8x128xf32>
    tpu.vector_store %arg1[%c0_2, %c0_3, %c0_4], %8 {strides = array<i32>} : memref<2x8x128xf32, #tpu.memory_space<vmem>>, vector<2x8x128xf32>,
    return
  }
}

module attributes {stable_mosaic.version = 11 : i64} {
  func.func @block_kernel(%arg0: i32, %arg1: memref<2x8x128xf32, #tpu.memory_space<vmem>>, %arg2: memref<1x8x128xf32, #tpu.memory_space<vmem>>, %arg3: memref<1x128xf32, #tpu.memory_space<vmem>>, %arg4: memref<1x128xf32, #tpu.memory_space<vmem>>, %arg5: memref<128x128xbf16, #tpu.memory_space<vmem>>, %arg6: memref<1x128xf32, #tpu.memory_space<vmem>>, %arg7: memref<128x128xbf16, #tpu.memory_space<vmem>>, %arg8: memref<1x128xf32, #tpu.memory_space<vmem>>, %arg9: memref<128x128xbf16, #tpu.memory_space<vmem>>, %arg10: memref<1x128xf32, #tpu.memory_space<vmem>>, %arg11: memref<128x128xbf16, #tpu.memory_space<vmem>>, %arg12: memref<1x128xf32, #tpu.memory_space<vmem>>, %arg13: memref<1x128xf32, #tpu.memory_space<vmem>>, %arg14: memref<1x128xf32, #tpu.memory_space<vmem>>, %arg15: memref<128x512xbf16, #tpu.memory_space<vmem>>, %arg16: memref<1x512xf32, #tpu.memory_space<vmem>>, %arg17: memref<512x128xbf16, #tpu.memory_space<vmem>>, %arg18: memref<1x128xf32, #tpu.memory_space<vmem>>, %arg19: memref<2x8x128xbf16, #tpu.memory_space<vmem>>) attributes {dimension_semantics = [#tpu.dimension_semantics<parallel>], iteration_bounds = array<i64: 1>, scalar_prefetch = 0 : i64, scratch_operands = 0 : i64, tpu.core_type = #tpu.core_type<tc>, window_params = [{transform_indices = @transform_0, window_bounds = array<i64: 2, 8, 128>}, {pipeline_mode = #tpu.pipeline_mode<synchronous>, transform_indices = @transform_1, window_bounds = array<i64: 1, 8, 128>}, {pipeline_mode = #tpu.pipeline_mode<synchronous>, transform_indices = @transform_2, window_bounds = array<i64: 1, 128>}, {pipeline_mode = #tpu.pipeline_mode<synchronous>, transform_indices = @transform_3, window_bounds = array<i64: 1, 128>}, {pipeline_mode = #tpu.pipeline_mode<synchronous>, transform_indices = @transform_4, window_bounds = array<i64: 128, 128>}, {pipeline_mode = #tpu.pipeline_mode<synchronous>, transform_indices = @transform_5, window_bounds = array<i64: 1, 128>}, {pipeline_mode = #tpu.pipeline_mode<synchronous>, transform_indices = @transform_6, window_bounds = array<i64: 128, 128>}, {pipeline_mode = #tpu.pipeline_mode<synchronous>, transform_indices = @transform_7, window_bounds = array<i64: 1, 128>}, {pipeline_mode = #tpu.pipeline_mode<synchronous>, transform_indices = @transform_8, window_bounds = array<i64: 128, 128>}, {pipeline_mode = #tpu.pipeline_mode<synchronous>, transform_indices = @transform_9, window_bounds = array<i64: 1, 128>}, {pipeline_mode = #tpu.pipeline_mode<synchronous>, transform_indices = @transform_10, window_bounds = array<i64: 128, 128>}, {pipeline_mode = #tpu.pipeline_mode<synchronous>, transform_indices = @transform_11, window_bounds = array<i64: 1, 128>}, {pipeline_mode = #tpu.pipeline_mode<synchronous>, transform_indices = @transform_12, window_bounds = array<i64: 1, 128>}, {pipeline_mode = #tpu.pipeline_mode<synchronous>, transform_indices = @transform_13, window_bounds = array<i64: 1, 128>}, {pipeline_mode = #tpu.pipeline_mode<synchronous>, transform_indices = @transform_14, window_bounds = array<i64: 128, 512>}, {pipeline_mode = #tpu.pipeline_mode<synchronous>, transform_indices = @transform_15, window_bounds = array<i64: 1, 512>}, {pipeline_mode = #tpu.pipeline_mode<synchronous>, transform_indices = @transform_16, window_bounds = array<i64: 512, 128>}, {pipeline_mode = #tpu.pipeline_mode<synchronous>, transform_indices = @transform_17, window_bounds = array<i64: 1, 128>}, {transform_indices = @transform_18, window_bounds = array<i64: 2, 8, 128>}]} {
    %c0 = arith.constant 0 : index
    %c0_0 = arith.constant 0 : index
    %c0_1 = arith.constant 0 : index
    %0 = vector.load %arg1[%c0, %c0_0, %c0_1] : memref<2x8x128xf32, #tpu.memory_space<vmem>>, vector<2x8x128xf32>
    %c0_2 = arith.constant 0 : index
    %c0_3 = arith.constant 0 : index
    %c0_4 = arith.constant 0 : index
    %1 = vector.load %arg2[%c0_2, %c0_3, %c0_4] : memref<1x8x128xf32, #tpu.memory_space<vmem>>, vector<1x8x128xf32>
    %2 = vector.broadcast %1 : vector<1x8x128xf32> to vector<2x8x128xf32>
    %3 = arith.addf %0, %2 : vector<2x8x128xf32>
    %4 = vector.shape_cast %3 : vector<2x8x128xf32> to vector<16x128xf32>
    %c0_5 = arith.constant 0 : index
    %c0_6 = arith.constant 0 : index
    %5 = vector.load %arg3[%c0_5, %c0_6] : memref<1x128xf32, #tpu.memory_space<vmem>>, vector<1x128xf32>
    %c0_7 = arith.constant 0 : index
    %c0_8 = arith.constant 0 : index
    %6 = vector.load %arg4[%c0_7, %c0_8] : memref<1x128xf32, #tpu.memory_space<vmem>>, vector<1x128xf32>
    %cst = arith.constant dense<0.000000e+00> : vector<16xf32>
    %7 = vector.multi_reduction <add>, %4, %cst [1] : vector<16x128xf32> to vector<16xf32>
    %8 = vector.shape_cast %7 : vector<16xf32> to vector<16x1xf32>
    %cst_9 = arith.constant 1.280000e+02 : f32
    %9 = vector.broadcast %cst_9 : f32 to vector<16x1xf32>
    %10 = arith.divf %8, %9 : vector<16x1xf32>
    %11 = vector.broadcast %10 : vector<16x1xf32> to vector<16x128xf32>
    %12 = arith.subf %4, %11 : vector<16x128xf32>
    %13 = arith.mulf %12, %12 : vector<16x128xf32>
    %cst_10 = arith.constant dense<0.000000e+00> : vector<16xf32>
    %14 = vector.multi_reduction <add>, %13, %cst_10 [1] : vector<16x128xf32> to vector<16xf32>
    %15 = vector.shape_cast %14 : vector<16xf32> to vector<16x1xf32>
    %cst_11 = arith.constant 1.280000e+02 : f32
    %16 = vector.broadcast %cst_11 : f32 to vector<16x1xf32>
    %17 = arith.divf %15, %16 : vector<16x1xf32>
    %cst_12 = arith.constant 9.99999997E-7 : f32
    %18 = vector.broadcast %cst_12 : f32 to vector<16x1xf32>
    %19 = arith.addf %17, %18 : vector<16x1xf32>
    %20 = math.rsqrt %19 : vector<16x1xf32>
    %21 = vector.broadcast %20 : vector<16x1xf32> to vector<16x128xf32>
    %22 = arith.mulf %12, %21 : vector<16x128xf32>
    %23 = vector.broadcast %5 : vector<1x128xf32> to vector<16x128xf32>
    %24 = arith.mulf %22, %23 : vector<16x128xf32>
    %25 = vector.broadcast %6 : vector<1x128xf32> to vector<16x128xf32>
    %26 = arith.addf %24, %25 : vector<16x128xf32>
    %27 = arith.truncf %26 : vector<16x128xf32> to vector<16x128xbf16>
    %c0_13 = arith.constant 0 : index
    %c0_14 = arith.constant 0 : index
    %28 = vector.load %arg5[%c0_13, %c0_14] : memref<128x128xbf16, #tpu.memory_space<vmem>>, vector<128x128xbf16>
    %cst_15 = arith.constant dense<0.000000e+00> : vector<16x128xf32>
    %29 = tpu.matmul %27, %28, %cst_15 {dimension_numbers = #tpu.dot_dimension_numbers<[1], [0], [0], [1], [0, 0, 1, 1], [], []>} : vector<16x128xbf16>, vector<128x128xbf16>, vector<16x128xf32> -> vector<16x128xf32>
    %c0_16 = arith.constant 0 : index
    %c0_17 = arith.constant 0 : index
    %30 = vector.load %arg6[%c0_16, %c0_17] : memref<1x128xf32, #tpu.memory_space<vmem>>, vector<1x128xf32>
    %31 = vector.broadcast %30 : vector<1x128xf32> to vector<16x128xf32>
    %32 = arith.addf %29, %31 : vector<16x128xf32>
    %c0_18 = arith.constant 0 : index
    %c0_19 = arith.constant 0 : index
    %33 = vector.load %arg7[%c0_18, %c0_19] : memref<128x128xbf16, #tpu.memory_space<vmem>>, vector<128x128xbf16>
    %cst_20 = arith.constant dense<0.000000e+00> : vector<16x128xf32>
    %34 = tpu.matmul %27, %33, %cst_20 {dimension_numbers = #tpu.dot_dimension_numbers<[1], [0], [0], [1], [0, 0, 1, 1], [], []>} : vector<16x128xbf16>, vector<128x128xbf16>, vector<16x128xf32> -> vector<16x128xf32>
    %c0_21 = arith.constant 0 : index
    %c0_22 = arith.constant 0 : index
    %35 = vector.load %arg8[%c0_21, %c0_22] : memref<1x128xf32, #tpu.memory_space<vmem>>, vector<1x128xf32>
    %36 = vector.broadcast %35 : vector<1x128xf32> to vector<16x128xf32>
    %37 = arith.addf %34, %36 : vector<16x128xf32>
    %c0_23 = arith.constant 0 : index
    %c0_24 = arith.constant 0 : index
    %38 = vector.load %arg9[%c0_23, %c0_24] : memref<128x128xbf16, #tpu.memory_space<vmem>>, vector<128x128xbf16>
    %cst_25 = arith.constant dense<0.000000e+00> : vector<16x128xf32>
    %39 = tpu.matmul %27, %38, %cst_25 {dimension_numbers = #tpu.dot_dimension_numbers<[1], [0], [0], [1], [0, 0, 1, 1], [], []>} : vector<16x128xbf16>, vector<128x128xbf16>, vector<16x128xf32> -> vector<16x128xf32>
    %c0_26 = arith.constant 0 : index
    %c0_27 = arith.constant 0 : index
    %40 = vector.load %arg10[%c0_26, %c0_27] : memref<1x128xf32, #tpu.memory_space<vmem>>, vector<1x128xf32>
    %41 = vector.broadcast %40 : vector<1x128xf32> to vector<16x128xf32>
    %42 = arith.addf %39, %41 : vector<16x128xf32>
    %43 = vector.shape_cast %32 : vector<16x128xf32> to vector<2x8x128xf32>
    %44 = vector.extract_strided_slice %43 {offsets = [0, 0, 0], sizes = [2, 8, 32], strides = [1, 1, 1]} : vector<2x8x128xf32> to vector<2x8x32xf32>
    %45 = vector.extract_strided_slice %43 {offsets = [0, 0, 32], sizes = [2, 8, 32], strides = [1, 1, 1]} : vector<2x8x128xf32> to vector<2x8x32xf32>
    %46 = vector.extract_strided_slice %43 {offsets = [0, 0, 64], sizes = [2, 8, 32], strides = [1, 1, 1]} : vector<2x8x128xf32> to vector<2x8x32xf32>
    %47 = vector.extract_strided_slice %43 {offsets = [0, 0, 96], sizes = [2, 8, 32], strides = [1, 1, 1]} : vector<2x8x128xf32> to vector<2x8x32xf32>
    %48 = vector.shape_cast %44 : vector<2x8x32xf32> to vector<1x2x8x32xf32>
    %49 = vector.shape_cast %45 : vector<2x8x32xf32> to vector<1x2x8x32xf32>
    %50 = vector.shape_cast %46 : vector<2x8x32xf32> to vector<1x2x8x32xf32>
    %51 = vector.shape_cast %47 : vector<2x8x32xf32> to vector<1x2x8x32xf32>
    %52 = tpu.concatenate %48, %49, %50, %51 in 0 : vector<1x2x8x32xf32>, vector<1x2x8x32xf32>, vector<1x2x8x32xf32>, vector<1x2x8x32xf32> -> vector<4x2x8x32xf32>
    %53 = vector.shape_cast %52 : vector<4x2x8x32xf32> to vector<8x8x32xf32>
    %54 = arith.truncf %53 : vector<8x8x32xf32> to vector<8x8x32xbf16>
    %55 = vector.shape_cast %37 : vector<16x128xf32> to vector<2x8x128xf32>
    %56 = vector.extract_strided_slice %55 {offsets = [0, 0, 0], sizes = [2, 8, 32], strides = [1, 1, 1]} : vector<2x8x128xf32> to vector<2x8x32xf32>
    %57 = vector.extract_strided_slice %55 {offsets = [0, 0, 32], sizes = [2, 8, 32], strides = [1, 1, 1]} : vector<2x8x128xf32> to vector<2x8x32xf32>
    %58 = vector.extract_strided_slice %55 {offsets = [0, 0, 64], sizes = [2, 8, 32], strides = [1, 1, 1]} : vector<2x8x128xf32> to vector<2x8x32xf32>
    %59 = vector.extract_strided_slice %55 {offsets = [0, 0, 96], sizes = [2, 8, 32], strides = [1, 1, 1]} : vector<2x8x128xf32> to vector<2x8x32xf32>
    %60 = vector.shape_cast %56 : vector<2x8x32xf32> to vector<1x2x8x32xf32>
    %61 = vector.shape_cast %57 : vector<2x8x32xf32> to vector<1x2x8x32xf32>
    %62 = vector.shape_cast %58 : vector<2x8x32xf32> to vector<1x2x8x32xf32>
    %63 = vector.shape_cast %59 : vector<2x8x32xf32> to vector<1x2x8x32xf32>
    %64 = tpu.concatenate %60, %61, %62, %63 in 0 : vector<1x2x8x32xf32>, vector<1x2x8x32xf32>, vector<1x2x8x32xf32>, vector<1x2x8x32xf32> -> vector<4x2x8x32xf32>
    %65 = vector.shape_cast %64 : vector<4x2x8x32xf32> to vector<8x8x32xf32>
    %66 = arith.truncf %65 : vector<8x8x32xf32> to vector<8x8x32xbf16>
    %67 = vector.shape_cast %42 : vector<16x128xf32> to vector<2x8x128xf32>
    %68 = vector.extract_strided_slice %67 {offsets = [0, 0, 0], sizes = [2, 8, 32], strides = [1, 1, 1]} : vector<2x8x128xf32> to vector<2x8x32xf32>
    %69 = vector.extract_strided_slice %67 {offsets = [0, 0, 32], sizes = [2, 8, 32], strides = [1, 1, 1]} : vector<2x8x128xf32> to vector<2x8x32xf32>
    %70 = vector.extract_strided_slice %67 {offsets = [0, 0, 64], sizes = [2, 8, 32], strides = [1, 1, 1]} : vector<2x8x128xf32> to vector<2x8x32xf32>
    %71 = vector.extract_strided_slice %67 {offsets = [0, 0, 96], sizes = [2, 8, 32], strides = [1, 1, 1]} : vector<2x8x128xf32> to vector<2x8x32xf32>
    %72 = vector.shape_cast %68 : vector<2x8x32xf32> to vector<1x2x8x32xf32>
    %73 = vector.shape_cast %69 : vector<2x8x32xf32> to vector<1x2x8x32xf32>
    %74 = vector.shape_cast %70 : vector<2x8x32xf32> to vector<1x2x8x32xf32>
    %75 = vector.shape_cast %71 : vector<2x8x32xf32> to vector<1x2x8x32xf32>
    %76 = tpu.concatenate %72, %73, %74, %75 in 0 : vector<1x2x8x32xf32>, vector<1x2x8x32xf32>, vector<1x2x8x32xf32>, vector<1x2x8x32xf32> -> vector<4x2x8x32xf32>
    %77 = vector.shape_cast %76 : vector<4x2x8x32xf32> to vector<8x8x32xf32>
    %78 = arith.truncf %77 : vector<8x8x32xf32> to vector<8x8x32xbf16>
    %cst_28 = arith.constant dense<0.000000e+00> : vector<8x8x8xf32>
    %79 = tpu.matmul %54, %66, %cst_28 {dimension_numbers = #tpu.dot_dimension_numbers<[2], [2], [1], [1], [0, 0, 0, 1, 1, 1], [0], [0]>} : vector<8x8x32xbf16>, vector<8x8x32xbf16>, vector<8x8x8xf32> -> vector<8x8x8xf32>
    %cst_29 = arith.constant dense<0xFF800000> : vector<8x8xf32>
    %80 = vector.multi_reduction <maximumf>, %79, %cst_29 [2] : vector<8x8x8xf32> to vector<8x8xf32>
    %81 = vector.shape_cast %80 : vector<8x8xf32> to vector<8x8x1xf32>
    %82 = vector.broadcast %81 : vector<8x8x1xf32> to vector<8x8x8xf32>
    %83 = arith.subf %79, %82 : vector<8x8x8xf32>
    %84 = math.exp %83 : vector<8x8x8xf32>
    %cst_30 = arith.constant dense<0.000000e+00> : vector<8x8xf32>
    %85 = vector.multi_reduction <add>, %84, %cst_30 [2] : vector<8x8x8xf32> to vector<8x8xf32>
    %86 = vector.shape_cast %85 : vector<8x8xf32> to vector<8x8x1xf32>
    %87 = tpu.reciprocal %86 {approx = true} : vector<8x8x1xf32> -> vector<8x8x1xf32>
    %88 = vector.broadcast %87 : vector<8x8x1xf32> to vector<8x8x8xf32>
    %89 = arith.mulf %84, %88 : vector<8x8x8xf32>
    %90 = arith.truncf %89 : vector<8x8x8xf32> to vector<8x8x8xbf16>
    %cst_31 = arith.constant dense<0.000000e+00> : vector<8x8x32xf32>
    %91 = tpu.matmul %90, %78, %cst_31 {dimension_numbers = #tpu.dot_dimension_numbers<[2], [1], [1], [2], [0, 0, 0, 1, 1, 2], [0], [0]>} : vector<8x8x8xbf16>, vector<8x8x32xbf16>, vector<8x8x32xf32> -> vector<8x8x32xf32>
    %92 = vector.shape_cast %91 : vector<8x8x32xf32> to vector<4x2x8x32xf32>
    %93 = vector.extract_strided_slice %92 {offsets = [0, 0, 0, 0], sizes = [1, 2, 8, 32], strides = [1, 1, 1, 1]} : vector<4x2x8x32xf32> to vector<1x2x8x32xf32>
    %94 = vector.shape_cast %93 : vector<1x2x8x32xf32> to vector<2x8x32xf32>
    %95 = vector.extract_strided_slice %92 {offsets = [1, 0, 0, 0], sizes = [1, 2, 8, 32], strides = [1, 1, 1, 1]} : vector<4x2x8x32xf32> to vector<1x2x8x32xf32>
    %96 = vector.shape_cast %95 : vector<1x2x8x32xf32> to vector<2x8x32xf32>
    %97 = vector.extract_strided_slice %92 {offsets = [2, 0, 0, 0], sizes = [1, 2, 8, 32], strides = [1, 1, 1, 1]} : vector<4x2x8x32xf32> to vector<1x2x8x32xf32>
    %98 = vector.shape_cast %97 : vector<1x2x8x32xf32> to vector<2x8x32xf32>
    %99 = vector.extract_strided_slice %92 {offsets = [3, 0, 0, 0], sizes = [1, 2, 8, 32], strides = [1, 1, 1, 1]} : vector<4x2x8x32xf32> to vector<1x2x8x32xf32>
    %100 = vector.shape_cast %99 : vector<1x2x8x32xf32> to vector<2x8x32xf32>
    %101 = tpu.concatenate %94, %96, %98, %100 in 2 : vector<2x8x32xf32>, vector<2x8x32xf32>, vector<2x8x32xf32>, vector<2x8x32xf32> -> vector<2x8x128xf32>
    %102 = vector.shape_cast %101 : vector<2x8x128xf32> to vector<16x128xf32>
    %103 = arith.truncf %102 : vector<16x128xf32> to vector<16x128xbf16>
    %c0_32 = arith.constant 0 : index
    %c0_33 = arith.constant 0 : index
    %104 = vector.load %arg11[%c0_32, %c0_33] : memref<128x128xbf16, #tpu.memory_space<vmem>>, vector<128x128xbf16>
    %cst_34 = arith.constant dense<0.000000e+00> : vector<16x128xf32>
    %105 = tpu.matmul %103, %104, %cst_34 {dimension_numbers = #tpu.dot_dimension_numbers<[1], [0], [0], [1], [0, 0, 1, 1], [], []>} : vector<16x128xbf16>, vector<128x128xbf16>, vector<16x128xf32> -> vector<16x128xf32>
    %c0_35 = arith.constant 0 : index
    %c0_36 = arith.constant 0 : index
    %106 = vector.load %arg12[%c0_35, %c0_36] : memref<1x128xf32, #tpu.memory_space<vmem>>, vector<1x128xf32>
    %107 = vector.broadcast %106 : vector<1x128xf32> to vector<16x128xf32>
    %108 = arith.addf %105, %107 : vector<16x128xf32>
    %109 = arith.addf %4, %108 : vector<16x128xf32>
    %c0_37 = arith.constant 0 : index
    %c0_38 = arith.constant 0 : index
    %110 = vector.load %arg13[%c0_37, %c0_38] : memref<1x128xf32, #tpu.memory_space<vmem>>, vector<1x128xf32>
    %c0_39 = arith.constant 0 : index
    %c0_40 = arith.constant 0 : index
    %111 = vector.load %arg14[%c0_39, %c0_40] : memref<1x128xf32, #tpu.memory_space<vmem>>, vector<1x128xf32>
    %cst_41 = arith.constant dense<0.000000e+00> : vector<16xf32>
    %112 = vector.multi_reduction <add>, %109, %cst_41 [1] : vector<16x128xf32> to vector<16xf32>
    %113 = vector.shape_cast %112 : vector<16xf32> to vector<16x1xf32>
    %cst_42 = arith.constant 1.280000e+02 : f32
    %114 = vector.broadcast %cst_42 : f32 to vector<16x1xf32>
    %115 = arith.divf %113, %114 : vector<16x1xf32>
    %116 = vector.broadcast %115 : vector<16x1xf32> to vector<16x128xf32>
    %117 = arith.subf %109, %116 : vector<16x128xf32>
    %118 = arith.mulf %117, %117 : vector<16x128xf32>
    %cst_43 = arith.constant dense<0.000000e+00> : vector<16xf32>
    %119 = vector.multi_reduction <add>, %118, %cst_43 [1] : vector<16x128xf32> to vector<16xf32>
    %120 = vector.shape_cast %119 : vector<16xf32> to vector<16x1xf32>
    %cst_44 = arith.constant 1.280000e+02 : f32
    %121 = vector.broadcast %cst_44 : f32 to vector<16x1xf32>
    %122 = arith.divf %120, %121 : vector<16x1xf32>
    %cst_45 = arith.constant 9.99999997E-7 : f32
    %123 = vector.broadcast %cst_45 : f32 to vector<16x1xf32>
    %124 = arith.addf %122, %123 : vector<16x1xf32>
    %125 = math.rsqrt %124 : vector<16x1xf32>
    %126 = vector.broadcast %125 : vector<16x1xf32> to vector<16x128xf32>
    %127 = arith.mulf %117, %126 : vector<16x128xf32>
    %128 = vector.broadcast %110 : vector<1x128xf32> to vector<16x128xf32>
    %129 = arith.mulf %127, %128 : vector<16x128xf32>
    %130 = vector.broadcast %111 : vector<1x128xf32> to vector<16x128xf32>
    %131 = arith.addf %129, %130 : vector<16x128xf32>
    %132 = arith.truncf %131 : vector<16x128xf32> to vector<16x128xbf16>
    %c0_46 = arith.constant 0 : index
    %c0_47 = arith.constant 0 : index
    %133 = vector.load %arg15[%c0_46, %c0_47] : memref<128x512xbf16, #tpu.memory_space<vmem>>, vector<128x512xbf16>
    %cst_48 = arith.constant dense<0.000000e+00> : vector<16x512xf32>
    %134 = tpu.matmul %132, %133, %cst_48 {dimension_numbers = #tpu.dot_dimension_numbers<[1], [0], [0], [1], [0, 0, 1, 1], [], []>} : vector<16x128xbf16>, vector<128x512xbf16>, vector<16x512xf32> -> vector<16x512xf32>
    %c0_49 = arith.constant 0 : index
    %c0_50 = arith.constant 0 : index
    %135 = vector.load %arg16[%c0_49, %c0_50] : memref<1x512xf32, #tpu.memory_space<vmem>>, vector<1x512xf32>
    %136 = vector.broadcast %135 : vector<1x512xf32> to vector<16x512xf32>
    %137 = arith.addf %134, %136 : vector<16x512xf32>
    %138 = arith.mulf %137, %137 : vector<16x512xf32>
    %139 = arith.mulf %137, %138 : vector<16x512xf32>
    %cst_51 = arith.constant 4.471500e-02 : f32
    %140 = vector.broadcast %cst_51 : f32 to vector<16x512xf32>
    %141 = arith.mulf %140, %139 : vector<16x512xf32>
    %142 = arith.addf %137, %141 : vector<16x512xf32>
    %cst_52 = arith.constant 0.797884583 : f32
    %143 = vector.broadcast %cst_52 : f32 to vector<16x512xf32>
    %144 = arith.mulf %143, %142 : vector<16x512xf32>
    %145 = math.tanh %144 : vector<16x512xf32>
    %cst_53 = arith.constant 1.000000e+00 : f32
    %146 = vector.broadcast %cst_53 : f32 to vector<16x512xf32>
    %147 = arith.addf %146, %145 : vector<16x512xf32>
    %cst_54 = arith.constant 5.000000e-01 : f32
    %148 = vector.broadcast %cst_54 : f32 to vector<16x512xf32>
    %149 = arith.mulf %148, %147 : vector<16x512xf32>
    %150 = arith.mulf %137, %149 : vector<16x512xf32>
    %151 = arith.truncf %150 : vector<16x512xf32> to vector<16x512xbf16>
    %c0_55 = arith.constant 0 : index
    %c0_56 = arith.constant 0 : index
    %152 = vector.load %arg17[%c0_55, %c0_56] : memref<512x128xbf16, #tpu.memory_space<vmem>>, vector<512x128xbf16>
    %cst_57 = arith.constant dense<0.000000e+00> : vector<16x128xf32>
    %153 = tpu.matmul %151, %152, %cst_57 {dimension_numbers = #tpu.dot_dimension_numbers<[1], [0], [0], [1], [0, 0, 1, 1], [], []>} : vector<16x512xbf16>, vector<512x128xbf16>, vector<16x128xf32> -> vector<16x128xf32>
    %c0_58 = arith.constant 0 : index
    %c0_59 = arith.constant 0 : index
    %154 = vector.load %arg18[%c0_58, %c0_59] : memref<1x128xf32, #tpu.memory_space<vmem>>, vector<1x128xf32>
    %155 = vector.broadcast %154 : vector<1x128xf32> to vector<16x128xf32>
    %156 = arith.addf %153, %155 : vector<16x128xf32>
    %157 = arith.addf %109, %156 : vector<16x128xf32>
    %158 = vector.shape_cast %157 : vector<16x128xf32> to vector<2x8x128xf32>
    %159 = arith.truncf %158 : vector<2x8x128xf32> to vector<2x8x128xbf16>
    %c0_60 = arith.constant 0 : index
    %c0_61 = arith.constant 0 : index
    %c0_62 = arith.constant 0 : index
    %160 = vector.load %arg19[%c0_60, %c0_61, %c0_62] : memref<2x8x128xbf16, #tpu.memory_space<vmem>>, vector<2x8x128xbf16>
    tpu.vector_store %arg19[%c0_60, %c0_61, %c0_62], %159 {strides = array<i32>} : memref<2x8x128xbf16, #tpu.memory_space<vmem>>, vector<2x8x128xbf16>,
    return
  }
  func.func @transform_0(%arg0: i32) -> (i32, i32, i32) {
    %c0_i32 = arith.constant 0 : i32
    %c0_i32_0 = arith.constant 0 : i32
    %c0_i32_1 = arith.constant 0 : i32
    return %arg0, %c0_i32, %c0_i32_0 : i32, i32, i32
  }
  func.func @transform_1(%arg0: i32) -> (i32, i32, i32) {
    %c0_i32 = arith.constant 0 : i32
    %c0_i32_0 = arith.constant 0 : i32
    %c0_i32_1 = arith.constant 0 : i32
    %c0_i32_2 = arith.constant 0 : i32
    return %c0_i32, %c0_i32_0, %c0_i32_1 : i32, i32, i32
  }
  func.func @transform_2(%arg0: i32) -> (i32, i32) {
    %c0_i32 = arith.constant 0 : i32
    %c0_i32_0 = arith.constant 0 : i32
    %c0_i32_1 = arith.constant 0 : i32
    return %c0_i32, %c0_i32_0 : i32, i32
  }
  func.func @transform_3(%arg0: i32) -> (i32, i32) {
    %c0_i32 = arith.constant 0 : i32
    %c0_i32_0 = arith.constant 0 : i32
    %c0_i32_1 = arith.constant 0 : i32
    return %c0_i32, %c0_i32_0 : i32, i32
  }
  func.func @transform_4(%arg0: i32) -> (i32, i32) {
    %c0_i32 = arith.constant 0 : i32
    %c0_i32_0 = arith.constant 0 : i32
    %c0_i32_1 = arith.constant 0 : i32
    return %c0_i32, %c0_i32_0 : i32, i32
  }
  func.func @transform_5(%arg0: i32) -> (i32, i32) {
    %c0_i32 = arith.constant 0 : i32
    %c0_i32_0 = arith.constant 0 : i32
    %c0_i32_1 = arith.constant 0 : i32
    return %c0_i32, %c0_i32_0 : i32, i32
  }
  func.func @transform_6(%arg0: i32) -> (i32, i32) {
    %c0_i32 = arith.constant 0 : i32
    %c0_i32_0 = arith.constant 0 : i32
    %c0_i32_1 = arith.constant 0 : i32
    return %c0_i32, %c0_i32_0 : i32, i32
  }
  func.func @transform_7(%arg0: i32) -> (i32, i32) {
    %c0_i32 = arith.constant 0 : i32
    %c0_i32_0 = arith.constant 0 : i32
    %c0_i32_1 = arith.constant 0 : i32
    return %c0_i32, %c0_i32_0 : i32, i32
  }
  func.func @transform_8(%arg0: i32) -> (i32, i32) {
    %c0_i32 = arith.constant 0 : i32
    %c0_i32_0 = arith.constant 0 : i32
    %c0_i32_1 = arith.constant 0 : i32
    return %c0_i32, %c0_i32_0 : i32, i32
  }
  func.func @transform_9(%arg0: i32) -> (i32, i32) {
    %c0_i32 = arith.constant 0 : i32
    %c0_i32_0 = arith.constant 0 : i32
    %c0_i32_1 = arith.constant 0 : i32
    return %c0_i32, %c0_i32_0 : i32, i32
  }
  func.func @transform_10(%arg0: i32) -> (i32, i32) {
    %c0_i32 = arith.constant 0 : i32
    %c0_i32_0 = arith.constant 0 : i32
    %c0_i32_1 = arith.constant 0 : i32
    return %c0_i32, %c0_i32_0 : i32, i32
  }
  func.func @transform_11(%arg0: i32) -> (i32, i32) {
    %c0_i32 = arith.constant 0 : i32
    %c0_i32_0 = arith.constant 0 : i32
    %c0_i32_1 = arith.constant 0 : i32
    return %c0_i32, %c0_i32_0 : i32, i32
  }
  func.func @transform_12(%arg0: i32) -> (i32, i32) {
    %c0_i32 = arith.constant 0 : i32
    %c0_i32_0 = arith.constant 0 : i32
    %c0_i32_1 = arith.constant 0 : i32
    return %c0_i32, %c0_i32_0 : i32, i32
  }
  func.func @transform_13(%arg0: i32) -> (i32, i32) {
    %c0_i32 = arith.constant 0 : i32
    %c0_i32_0 = arith.constant 0 : i32
    %c0_i32_1 = arith.constant 0 : i32
    return %c0_i32, %c0_i32_0 : i32, i32
  }
  func.func @transform_14(%arg0: i32) -> (i32, i32) {
    %c0_i32 = arith.constant 0 : i32
    %c0_i32_0 = arith.constant 0 : i32
    %c0_i32_1 = arith.constant 0 : i32
    return %c0_i32, %c0_i32_0 : i32, i32
  }
  func.func @transform_15(%arg0: i32) -> (i32, i32) {
    %c0_i32 = arith.constant 0 : i32
    %c0_i32_0 = arith.constant 0 : i32
    %c0_i32_1 = arith.constant 0 : i32
    return %c0_i32, %c0_i32_0 : i32, i32
  }
  func.func @transform_16(%arg0: i32) -> (i32, i32) {
    %c0_i32 = arith.constant 0 : i32
    %c0_i32_0 = arith.constant 0 : i32
    %c0_i32_1 = arith.constant 0 : i32
    return %c0_i32, %c0_i32_0 : i32, i32
  }
  func.func @transform_17(%arg0: i32) -> (i32, i32) {
    %c0_i32 = arith.constant 0 : i32
    %c0_i32_0 = arith.constant 0 : i32
    %c0_i32_1 = arith.constant 0 : i32
    return %c0_i32, %c0_i32_0 : i32, i32
  }
  func.func @transform_18(%arg0: i32) -> (i32, i32, i32) {
    %c0_i32 = arith.constant 0 : i32
    %c0_i32_0 = arith.constant 0 : i32
    %c0_i32_1 = arith.constant 0 : i32
    return %arg0, %c0_i32, %c0_i32_0 : i32, i32, i32
  }
}

</mosaic_0001>

<llo_original>
// kernel: tpu_custom_call.1
$region0: #{tpu_custom_call.1}
  #allocation0 [shape = 'u32[]', space=smem, size = 0x4, offset = 0x4, fixed_abs, tag = 'smem constant byte address 0x4 - core index']
  #allocation1 [shape = 'u32[72,128]{1,0:T(1,128)}', space=vmem, size = 0x9000, scoped, tag = 'internal scratch']
  %s0 = inlined_call_operand.hbm [shape: f32[2,8,128], index: 0, kind: input, shape index: {}]
  %s1 = inlined_call_operand.hbm [shape: f32[8,128], index: 1, kind: input, shape index: {}]
  %s2 = inlined_call_operand.hbm [shape: f32[2,8,128], index: 2, kind: output, shape index: {}]
  %s3 = sld [smem:[#allocation0]]
  $region49: #{tpu_custom_call.1} parent=0
    _
  %s5 = ssub.s32 1, %s3
  %s6 = scalar_select 0, %s5, %s3
  $region1: #{tpu_custom_call.1} parent=0
    #allocation2 [shape = 'u8[8192]{0}', space=vmem, size = 0x2000, scoped, tag = 'input window, operand 0']
    #allocation3 [shape = 's32[2]{0}', space=sflag, size = 0x8, scoped, tag = 'scoped memory for tpu_custom_call.1']
    #allocation4 [shape = 's32[2]{0}', space=sflag, size = 0x8, scoped, tag = 'scoped memory for tpu_custom_call.1']
    #allocation5 [shape = 'u8[4096]{0}', space=vmem, size = 0x1000, scoped, tag = 'input window, operand 1, single buffered']
    #allocation6 [shape = 's32[1]{0}', space=sflag, size = 0x4, scoped, tag = 'scoped memory for tpu_custom_call.1']
    #allocation7 [shape = 'u8[8192]{0}', space=vmem, size = 0x2000, scoped, tag = 'output window, operand 0']
    %7 = vsyncpa [#allocation3], 0
    %s8 = scalar_lea.sflag [#allocation3], 1
    %9 = vsyncpa %s8, 0
    %10 = vsyncpa [#allocation6], 0
    %11 = vsyncpa [#allocation4], 0
    %s12 = scalar_lea.sflag [#allocation4], 1
    %13 = vsyncpa %s12, 0
    loop: start=0, step=1, limit=4
    $region2: #{tpu_custom_call.1} parent=1 // loop_pre_header
      _
    $region3: #{tpu_custom_call.1} parent=1 // loop_header
      %s15 = sphi 0, %s19
      %p16 = scmp.ge.s32.totalorder %s15, 4
      %s25 = sphi 0, %s27
      %s28 = sphi 0, %s25
      %s29 = sphi 0, %s28
      %s45 = sphi 0, %s29
      %s49 = sphi 0, %s49
      %s51 = sphi 0, %s49
      %s52 = sphi 0, %s51
      %s66 = sphi 0, %s52
      %s72 = sphi 0, %s74
      %s75 = sphi 0, %s72
      %s76 = sphi 0, %s75
      %s92 = sphi 0, %s76
    $region4: #{tpu_custom_call.1} parent=1 // loop_header_branch
      %18 = sbr.rel (%p16) target = $region8
    $region5: #{tpu_custom_call.1} parent=1 // loop_body
      %s20 = ssub.s32 %s15, 1
      %s21 = ssub.s32 %s15, 2
      %s22 = sadd.s32 %s15, 1
      %s23 = ssub.s32 %s15, %s22
      %p24 = scmp.eq.s32.totalorder %s23, 0
      %s26 = sadd.s32 %s25, 1
      %s27 = scalar_select %p24, %s25, %s26
      %p30 = pneg %p24
      %p31 = scmp.eq.s32.totalorder %s15, 1
      %p32 = por %p30, %p31
      %p33 = scmp.ne.s32.totalorder %s25, %s28
      %p34 = scmp.eq.s32.totalorder %s15, 0
      %p35 = por %p33, %p34
      %p36 = scmp.ne.s32.totalorder %s25, %s28
      %p37 = scmp.eq.s32.totalorder %s20, 1
      %p38 = por %p36, %p37
      %p39 = scmp.ne.s32.totalorder %s28, %s29
      %p40 = scmp.eq.s32.totalorder %s20, 0
      %p41 = por %p39, %p40
      %p42 = scmp.ne.s32.totalorder %s28, %s29
      %p43 = scmp.eq.s32.totalorder %s21, 1
      %p44 = por %p42, %p43
      %p46 = scmp.ne.s32.totalorder %s29, %s45
      %p47 = scmp.eq.s32.totalorder %s21, 0
      %p48 = por %p46, %p47
      %s50 = sadd.s32 %s49, 1
      %p53 = scmp.eq.s32.totalorder %s15, 1
      %p54 = scmp.ne.s32.totalorder %s49, %s51
      %p55 = scmp.eq.s32.totalorder %s15, 0
      %p56 = por %p54, %p55
      %p57 = scmp.ne.s32.totalorder %s49, %s51
      %p58 = scmp.eq.s32.totalorder %s20, 1
      %p59 = por %p57, %p58
      %p60 = scmp.ne.s32.totalorder %s51, %s52
      %p61 = scmp.eq.s32.totalorder %s20, 0
      %p62 = por %p60, %p61
      %p63 = scmp.ne.s32.totalorder %s51, %s52
      %p64 = scmp.eq.s32.totalorder %s21, 1
      %p65 = por %p63, %p64
      %p67 = scmp.ne.s32.totalorder %s52, %s66
      %p68 = scmp.eq.s32.totalorder %s21, 0
      %p69 = por %p67, %p68
      %s70 = ssub.s32 %s15, %s22
      %p71 = scmp.eq.s32.totalorder %s70, 0
      %s73 = sadd.s32 %s72, 1
      %s74 = scalar_select %p71, %s72, %s73
      %p77 = pneg %p71
      %p78 = scmp.eq.s32.totalorder %s15, 1
      %p79 = por %p77, %p78
      %p80 = scmp.ne.s32.totalorder %s72, %s75
      %p81 = scmp.eq.s32.totalorder %s15, 0
      %p82 = por %p80, %p81
      %p83 = scmp.ne.s32.totalorder %s72, %s75
      %p84 = scmp.eq.s32.totalorder %s20, 1
      %p85 = por %p83, %p84
      %p86 = scmp.ne.s32.totalorder %s75, %s76
      %p87 = scmp.eq.s32.totalorder %s20, 0
      %p88 = por %p86, %p87
      %p89 = scmp.ne.s32.totalorder %s75, %s76
      %p90 = scmp.eq.s32.totalorder %s21, 1
      %p91 = por %p89, %p90
      %p93 = scmp.ne.s32.totalorder %s76, %s92
      %p94 = scmp.eq.s32.totalorder %s21, 0
      %p95 = por %p93, %p94
      %p96 = scmp.le.s32.totalorder 1, %s15
      %p97 = scmp.lt.s32.totalorder %s15, 3
      %p98 = pnand %p96, %p97
      %p99 = pneg %p98
      // Predicated region
      $region9: #{tpu_custom_call.1} parent=5 // pred_check
        _
      $region10: #{tpu_custom_call.1} parent=5 // pred_check_branch
        %101 = sbr.rel (%p98) target = $region12
      $region11: #{tpu_custom_call.1} parent=5 // pred_region
        %s102 = ssub.s32 %s15, 1
        // Predicated region
        $region13: #{tpu_custom_call.1} parent=11 // pred_check
          %p103 = pneg %p62
        $region14: #{tpu_custom_call.1} parent=11 // pred_check_branch
          %105 = sbr.rel (%p103) target = $region16
        $region15: #{tpu_custom_call.1} parent=11 // pred_region
          %107 = vsyncadd [#allocation6], 0
          %s109 = sshll.u32 %s1, 4
          %s110 = int_to_ptr.hbm [resolvable:$true] %s109
          %s111 = sshll.u32 [#allocation5], 4
          %s112 = int_to_ptr.vmem [resolvable:$true] %s111
          %114 = dma.hbm_to_vmem [thread:$0]  %s110, 128, %s112, [#allocation6]
        $region16: #{tpu_custom_call.1} parent=11 // pred_fallthru
          _
      $region12: #{tpu_custom_call.1} parent=5 // pred_fallthru
        _
      %p115 = scmp.lt.s32.totalorder %s15, 2
      // Predicated region
      $region17: #{tpu_custom_call.1} parent=5 // pred_check
        %p116 = pneg %p115
      $region18: #{tpu_custom_call.1} parent=5 // pred_check_branch
        %118 = sbr.rel (%p116) target = $region20
      $region19: #{tpu_custom_call.1} parent=5 // pred_region
        // Predicated region
        $region21: #{tpu_custom_call.1} parent=19 // pred_check
          %p119 = pneg %p35
        $region22: #{tpu_custom_call.1} parent=19 // pred_check_branch
          %121 = sbr.rel (%p119) target = $region24
        $region23: #{tpu_custom_call.1} parent=19 // pred_region
          %s122 = sand.u32 %s25, 1
          %s123 = scalar_lea.sflag [#allocation3], %s122
          %s124 = sand.u32 %s25, 1
          %s125 = smul.addr %s124, 8
          %s126 = scalar_lea.vmem [#allocation2], %s125
          %128 = vsyncadd %s123, 0
          %s129 = smul.addr %s15, 8
          %s130 = scalar_lea.hbm %s0, %s129
          %s132 = sshll.u32 %s130, 4
          %s133 = int_to_ptr.hbm [resolvable:$true] %s132
          %s134 = sshll.u32 %s126, 4
          %s135 = int_to_ptr.vmem [resolvable:$true] %s134
          %137 = dma.hbm_to_vmem [thread:$0]  %s133, 128, %s135, %s123
        $region24: #{tpu_custom_call.1} parent=19 // pred_fallthru
          _
      $region20: #{tpu_custom_call.1} parent=5 // pred_fallthru
        _
      %p138 = scmp.le.s32.totalorder 1, %s15
      %p139 = scmp.lt.s32.totalorder %s15, 3
      %p140 = pnand %p138, %p139
      %p141 = pneg %p140
      // Predicated region
      $region25: #{tpu_custom_call.1} parent=5 // pred_check
        _
      $region26: #{tpu_custom_call.1} parent=5 // pred_check_branch
        %143 = sbr.rel (%p140) target = $region28
      $region27: #{tpu_custom_call.1} parent=5 // pred_region
        %s144 = ssub.s32 %s15, 1
        %s145 = sand.u32 %s28, 1
        %s146 = scalar_lea.sflag [#allocation3], %s145
        %s147 = sand.u32 %s28, 1
        %s148 = smul.addr %s147, 8
        %s149 = scalar_lea.vmem [#allocation2], %s148
        // Predicated region
        $region29: #{tpu_custom_call.1} parent=27 // pred_check
          %p150 = pneg %p41
        $region30: #{tpu_custom_call.1} parent=27 // pred_check_branch
          %152 = sbr.rel (%p150) target = $region32
        $region31: #{tpu_custom_call.1} parent=27 // pred_region
          %154 = dma.done %s146, 128
        $region32: #{tpu_custom_call.1} parent=27 // pred_fallthru
          _
        // Predicated region
        $region33: #{tpu_custom_call.1} parent=27 // pred_check
          %p155 = pneg %p62
        $region34: #{tpu_custom_call.1} parent=27 // pred_check_branch
          %157 = sbr.rel (%p155) target = $region36
        $region35: #{tpu_custom_call.1} parent=27 // pred_region
          %159 = dma.done [#allocation6], 128
        $region36: #{tpu_custom_call.1} parent=27 // pred_fallthru
          _
        %s160 = sand.u32 %s28, 1
        %s161 = scalar_lea.sflag [#allocation3], %s160
        %s162 = sand.u32 %s28, 1
        %s163 = smul.addr %s162, 8
        %s164 = scalar_lea.vmem [#allocation2], %s163
        %p165 = pneg %p41
        %p166 = pneg %p38
        %p167 = pneg %p62
        %p168 = pneg %p59
        %p169 = pneg %p88
        %p170 = pneg %p85
        %s171 = sand.u32 %s75, 1
        %s172 = scalar_lea.sflag [#allocation4], %s171
        %s173 = sand.u32 %s75, 1
        %s174 = smul.addr %s173, 8
        %s175 = scalar_lea.vmem [#allocation7], %s174
        %v176 = vld [vmem:[%s149] sm:$0xff]
        %v177 = vld [vmem:[#allocation5] sm:$0xff]
        %v178 = vadd.f32 %v176, %v177
        %179 = vst [vmem:[%s175] sm:$0xff] %v178
        %s180 = sand.u32 %s75, 1
        %s181 = scalar_lea.sflag [#allocation4], %s180
        %s182 = sand.u32 %s75, 1
        %s183 = smul.addr %s182, 8
        %s184 = scalar_lea.vmem [#allocation7], %s183
        // Predicated region
        $region37: #{tpu_custom_call.1} parent=27 // pred_check
          %p185 = pneg %p85
        $region38: #{tpu_custom_call.1} parent=27 // pred_check_branch
          %187 = sbr.rel (%p185) target = $region40
        $region39: #{tpu_custom_call.1} parent=27 // pred_region
          %189 = vsyncadd %s181, 0
          %s190 = smul.addr %s20, 8
          %s191 = scalar_lea.hbm %s2, %s190
          %s193 = sshll.u32 %s184, 4
          %s194 = int_to_ptr.vmem [resolvable:$true] %s193
          %s195 = sshll.u32 %s191, 4
          %s196 = int_to_ptr.hbm [resolvable:$true] %s195
          %198 = dma.vmem_to_hbm [thread:$0]  %s194, 128, %s196, %s181
        $region40: #{tpu_custom_call.1} parent=27 // pred_fallthru
          _
      $region28: #{tpu_custom_call.1} parent=5 // pred_fallthru
        _
      %p199 = scmp.le.s32.totalorder 2, %s15
      // Predicated region
      $region41: #{tpu_custom_call.1} parent=5 // pred_check
        %p200 = pneg %p199
      $region42: #{tpu_custom_call.1} parent=5 // pred_check_branch
        %202 = sbr.rel (%p200) target = $region44
      $region43: #{tpu_custom_call.1} parent=5 // pred_region
        %s203 = ssub.s32 %s15, 2
        // Predicated region
        $region45: #{tpu_custom_call.1} parent=43 // pred_check
          %p204 = pneg %p91
        $region46: #{tpu_custom_call.1} parent=43 // pred_check_branch
          %206 = sbr.rel (%p204) target = $region48
        $region47: #{tpu_custom_call.1} parent=43 // pred_region
          %s207 = sand.u32 %s76, 1
          %s208 = scalar_lea.sflag [#allocation4], %s207
          %s209 = sand.u32 %s76, 1
          %s210 = smul.addr %s209, 8
          %s211 = scalar_lea.vmem [#allocation7], %s210
          %213 = dma.done %s208, 128
        $region48: #{tpu_custom_call.1} parent=43 // pred_fallthru
          _
      $region44: #{tpu_custom_call.1} parent=5 // pred_fallthru
        _
    $region6: #{tpu_custom_call.1} parent=1 // loop_footer
      %s19 = sadd.s32 1, %s15
    $region7: #{tpu_custom_call.1} parent=1 // loop_footer_branch
      %14 = sbr.rel target = $region3
    $region8: #{tpu_custom_call.1} parent=1 // loop_exit
      _
    %214 = vsyncpa [#allocation3], 1
    %s215 = scalar_lea.sflag [#allocation3], 1
    %216 = vsyncpa %s215, 1
    %217 = vsyncpa [#allocation6], 1
    %218 = vsyncpa [#allocation4], 1
    %s219 = scalar_lea.sflag [#allocation4], 1
    %220 = vsyncpa %s219, 1

// kernel: tpu_custom_call.1
$region0: #{tpu_custom_call.1}
  #allocation0 [shape = 'u32[]', space=smem, size = 0x4, offset = 0x4, fixed_abs, tag = 'smem constant byte address 0x4 - core index']
  #allocation1 [shape = 'u32[72,128]{1,0:T(1,128)}', space=vmem, size = 0x9000, scoped, tag = 'internal scratch']
  %s0 = inlined_call_operand.hbm [shape: f32[2,8,128], index: 0, kind: input, shape index: {}]
  %s1 = inlined_call_operand.hbm [shape: f32[2,8,128], index: 1, kind: output, shape index: {}]
  %s2 = sld [smem:[#allocation0]]
  $region18: #{tpu_custom_call.1} parent=0
    _
  %s4 = ssub.s32 1, %s2
  %s5 = scalar_select 0, %s4, %s2
  $region1: #{tpu_custom_call.1} parent=0
    #allocation2 [shape = 'u8[8192]{0}', space=vmem, size = 0x2000, scoped, tag = 'input window, operand 0, single buffered']
    #allocation3 [shape = 's32[1]{0}', space=sflag, size = 0x4, scoped, tag = 'scoped memory for tpu_custom_call.1']
    #allocation4 [shape = 's32[1]{0}', space=sflag, size = 0x4, scoped, tag = 'scoped memory for tpu_custom_call.1']
    #allocation5 [shape = 'u8[8192]{0}', space=vmem, size = 0x2000, scoped, tag = 'output window, operand 0, single buffered']
    %6 = vsyncpa [#allocation3], 0
    %7 = vsyncpa [#allocation4], 0
    // Predicated region
    $region2: #{tpu_custom_call.1} parent=1 // pred_check
      _
    $region3: #{tpu_custom_call.1} parent=1 // pred_check_branch
      %9 = sbr.rel (0) target = $region5
    $region4: #{tpu_custom_call.1} parent=1 // pred_region
      %11 = vsyncadd [#allocation3], 0
      %s12 = sshll.u32 %s0, 4
      %s13 = int_to_ptr.hbm [resolvable:$true] %s12
      %s14 = sshll.u32 [#allocation2], 4
      %s15 = int_to_ptr.vmem [resolvable:$true] %s14
      %20 = dma.hbm_to_vmem [thread:$0]  %s13, 256, %s15, [#allocation3], 128, 128, 8
    $region5: #{tpu_custom_call.1} parent=1 // pred_fallthru
      _
    // Predicated region
    $region6: #{tpu_custom_call.1} parent=1 // pred_check
      _
    $region7: #{tpu_custom_call.1} parent=1 // pred_check_branch
      %22 = sbr.rel (0) target = $region9
    $region8: #{tpu_custom_call.1} parent=1 // pred_region
      %24 = dma.done [#allocation3], 256
    $region9: #{tpu_custom_call.1} parent=1 // pred_fallthru
      _
    %v25 = vld [vmem:[#allocation2] sm:$0xff]
    %v26 = vld [vmem:[#allocation2 + $0x8] sm:$0xff]
    %29 = vrot.lane.b32.xlu0 %v25, 96
    %v30 = vpop.permute.xlu0 %29
    %31 = vrot.lane.b32.xlu0 %v26, 96
    %v32 = vpop.permute.xlu0 %31
    %35 = vrot.lane.b32.xlu0 %v25, 64
    %v36 = vpop.permute.xlu0 %35
    %37 = vrot.lane.b32.xlu0 %v26, 64
    %v38 = vpop.permute.xlu0 %37
    %41 = vrot.lane.b32.xlu0 %v25, 32
    %v42 = vpop.permute.xlu0 %41
    %43 = vrot.lane.b32.xlu0 %v26, 32
    %v44 = vpop.permute.xlu0 %43
    %v47 = vrot.slane %v36, 4
    %vm48 = vcmask 1047556
    %v49 = vsel %vm48, %v47, %v25
    %v50 = vrot.slane %v25, 4
    %v51 = vsel %vm48, %v36, %v50
    %v53 = vunpack.c.l.s4 1983009808
    %v54 = vunpack.c.0.s8 %v53
    %v55 = vperm.slane %v49, %v54
    %v57 = vunpack.c.l.s4 1983009808
    %v58 = vunpack.c.0.s8 %v57
    %v59 = vperm.slane %v51, %v58
    %v60 = vrot.slane %v42, 4
    %v61 = vsel %vm48, %v60, %v30
    %v62 = vrot.slane %v30, 4
    %v63 = vsel %vm48, %v42, %v62
    %v65 = vunpack.c.l.s4 1983009808
    %v66 = vunpack.c.0.s8 %v65
    %v67 = vperm.slane %v61, %v66
    %v69 = vunpack.c.l.s4 1983009808
    %v70 = vunpack.c.0.s8 %v69
    %v71 = vperm.slane %v63, %v70
    %v72 = vrot.slane %v67, 4
    %v73 = vsel %vm48, %v72, %v55
    %v74 = vrot.slane %v55, 4
    %v75 = vsel %vm48, %v67, %v74
    %v77 = vunpack.c.l.s4 1934713408
    %v78 = vunpack.c.0.s8 %v77
    %v79 = vperm.slane %v73, %v78
    %v81 = vunpack.c.l.s4 1934713408
    %v82 = vunpack.c.0.s8 %v81
    %v83 = vperm.slane %v75, %v82
    %v84 = vrot.slane %v71, 4
    %v85 = vsel %vm48, %v84, %v59
    %v86 = vrot.slane %v59, 4
    %v87 = vsel %vm48, %v71, %v86
    %v89 = vunpack.c.l.s4 1934713408
    %v90 = vunpack.c.0.s8 %v89
    %v91 = vperm.slane %v85, %v90
    %v93 = vunpack.c.l.s4 1934713408
    %v94 = vunpack.c.0.s8 %v93
    %v95 = vperm.slane %v87, %v94
    %v96 = vrot.slane %v79, 4
    %v97 = vsel %vm48, 0.0, %v96
    %v98 = vrot.slane %v83, 4
    %v99 = vsel %vm48, 0.0, %v98
    %v100 = vrot.slane %v91, 4
    %v101 = vsel %vm48, 0.0, %v100
    %v102 = vrot.slane %v95, 4
    %v103 = vsel %vm48, 0.0, %v102
    %v104 = vrot.slane %v38, 4
    %v105 = vsel %vm48, %v104, %v26
    %v106 = vrot.slane %v26, 4
    %v107 = vsel %vm48, %v38, %v106
    %v109 = vunpack.c.l.s4 1983009808
    %v110 = vunpack.c.0.s8 %v109
    %v111 = vperm.slane %v105, %v110
    %v113 = vunpack.c.l.s4 1983009808
    %v114 = vunpack.c.0.s8 %v113
    %v115 = vperm.slane %v107, %v114
    %v116 = vrot.slane %v44, 4
    %v117 = vsel %vm48, %v116, %v32
    %v118 = vrot.slane %v32, 4
    %v119 = vsel %vm48, %v44, %v118
    %v121 = vunpack.c.l.s4 1983009808
    %v122 = vunpack.c.0.s8 %v121
    %v123 = vperm.slane %v117, %v122
    %v125 = vunpack.c.l.s4 1983009808
    %v126 = vunpack.c.0.s8 %v125
    %v127 = vperm.slane %v119, %v126
    %v128 = vrot.slane %v123, 4
    %v129 = vsel %vm48, %v128, %v111
    %v130 = vrot.slane %v111, 4
    %v131 = vsel %vm48, %v123, %v130
    %v133 = vunpack.c.l.s4 1934713408
    %v134 = vunpack.c.0.s8 %v133
    %v135 = vperm.slane %v129, %v134
    %v137 = vunpack.c.l.s4 1934713408
    %v138 = vunpack.c.0.s8 %v137
    %v139 = vperm.slane %v131, %v138
    %v140 = vrot.slane %v127, 4
    %v141 = vsel %vm48, %v140, %v115
    %v142 = vrot.slane %v115, 4
    %v143 = vsel %vm48, %v127, %v142
    %v145 = vunpack.c.l.s4 1934713408
    %v146 = vunpack.c.0.s8 %v145
    %v147 = vperm.slane %v141, %v146
    %v149 = vunpack.c.l.s4 1934713408
    %v150 = vunpack.c.0.s8 %v149
    %v151 = vperm.slane %v143, %v150
    %v152 = vrot.slane %v135, 4
    %v153 = vsel %vm48, 0.0, %v152
    %v154 = vrot.slane %v139, 4
    %v155 = vsel %vm48, 0.0, %v154
    %v156 = vrot.slane %v147, 4
    %v157 = vsel %vm48, 0.0, %v156
    %v158 = vrot.slane %v151, 4
    %v159 = vsel %vm48, 0.0, %v158
    %v160 = vsel %vm48, %v98, %v79
    %v162 = vunpack.c.l.s4 1983009808
    %v163 = vunpack.c.0.s8 %v162
    %v164 = vperm.slane %v160, %v163
    %v165 = vrot.slane %v99, 4
    %v166 = vsel %vm48, %v165, %v97
    %v168 = vunpack.c.l.s4 1983009808
    %v169 = vunpack.c.0.s8 %v168
    %v170 = vperm.slane %v166, %v169
    %v171 = vsel %vm48, %v102, %v91
    %v173 = vunpack.c.l.s4 1983009808
    %v174 = vunpack.c.0.s8 %v173
    %v175 = vperm.slane %v171, %v174
    %v176 = vrot.slane %v103, 4
    %v177 = vsel %vm48, %v176, %v101
    %v179 = vunpack.c.l.s4 1983009808
    %v180 = vunpack.c.0.s8 %v179
    %v181 = vperm.slane %v177, %v180
    %v182 = vrot.slane %v170, 4
    %v183 = vsel %vm48, %v182, %v164
    %v184 = vrot.slane %v164, 4
    %v185 = vsel %vm48, %v170, %v184
    %v187 = vunpack.c.l.s4 1934713408
    %v188 = vunpack.c.0.s8 %v187
    %v189 = vperm.slane %v183, %v188
    %v191 = vunpack.c.l.s4 1934713408
    %v192 = vunpack.c.0.s8 %v191
    %v193 = vperm.slane %v185, %v192
    %v194 = vrot.slane %v181, 4
    %v195 = vsel %vm48, %v194, %v175
    %v196 = vrot.slane %v175, 4
    %v197 = vsel %vm48, %v181, %v196
    %v199 = vunpack.c.l.s4 1934713408
    %v200 = vunpack.c.0.s8 %v199
    %v201 = vperm.slane %v195, %v200
    %v203 = vunpack.c.l.s4 1934713408
    %v204 = vunpack.c.0.s8 %v203
    %v205 = vperm.slane %v197, %v204
    %v206 = vrot.slane %v201, 4
    %v207 = vsel %vm48, %v206, %v189
    %v208 = vrot.slane %v189, 4
    %v209 = vsel %vm48, %v201, %v208
    %v210 = vrot.slane %v205, 4
    %v211 = vsel %vm48, %v210, %v193
    %v212 = vrot.slane %v193, 4
    %v213 = vsel %vm48, %v205, %v212
    %v214 = vsel %vm48, %v154, %v135
    %v216 = vunpack.c.l.s4 1983009808
    %v217 = vunpack.c.0.s8 %v216
    %v218 = vperm.slane %v214, %v217
    %v219 = vrot.slane %v155, 4
    %v220 = vsel %vm48, %v219, %v153
    %v222 = vunpack.c.l.s4 1983009808
    %v223 = vunpack.c.0.s8 %v222
    %v224 = vperm.slane %v220, %v223
    %v225 = vsel %vm48, %v158, %v147
    %v227 = vunpack.c.l.s4 1983009808
    %v228 = vunpack.c.0.s8 %v227
    %v229 = vperm.slane %v225, %v228
    %v230 = vrot.slane %v159, 4
    %v231 = vsel %vm48, %v230, %v157
    %v233 = vunpack.c.l.s4 1983009808
    %v234 = vunpack.c.0.s8 %v233
    %v235 = vperm.slane %v231, %v234
    %v236 = vrot.slane %v224, 4
    %v237 = vsel %vm48, %v236, %v218
    %v238 = vrot.slane %v218, 4
    %v239 = vsel %vm48, %v224, %v238
    %v241 = vunpack.c.l.s4 1934713408
    %v242 = vunpack.c.0.s8 %v241
    %v243 = vperm.slane %v237, %v242
    %v245 = vunpack.c.l.s4 1934713408
    %v246 = vunpack.c.0.s8 %v245
    %v247 = vperm.slane %v239, %v246
    %v248 = vrot.slane %v235, 4
    %v249 = vsel %vm48, %v248, %v229
    %v250 = vrot.slane %v229, 4
    %v251 = vsel %vm48, %v235, %v250
    %v253 = vunpack.c.l.s4 1934713408
    %v254 = vunpack.c.0.s8 %v253
    %v255 = vperm.slane %v249, %v254
    %v257 = vunpack.c.l.s4 1934713408
    %v258 = vunpack.c.0.s8 %v257
    %v259 = vperm.slane %v251, %v258
    %v260 = vrot.slane %v255, 4
    %v261 = vsel %vm48, %v260, %v243
    %v262 = vrot.slane %v243, 4
    %v263 = vsel %vm48, %v255, %v262
    %v264 = vrot.slane %v259, 4
    %v265 = vsel %vm48, %v264, %v247
    %v266 = vrot.slane %v247, 4
    %v267 = vsel %vm48, %v259, %v266
    %v268 = vrot.slane %v211, 4
    %v269 = vsel %vm48, %v268, %v207
    %v270 = vrot.slane %v207, 4
    %v271 = vsel %vm48, %v211, %v270
    %v273 = vunpack.c.l.s4 1983009808
    %v274 = vunpack.c.0.s8 %v273
    %v275 = vperm.slane %v269, %v274
    %v277 = vunpack.c.l.s4 1983009808
    %v278 = vunpack.c.0.s8 %v277
    %v279 = vperm.slane %v271, %v278
    %v280 = vrot.slane %v213, 4
    %v281 = vsel %vm48, %v280, %v209
    %v282 = vrot.slane %v209, 4
    %v283 = vsel %vm48, %v213, %v282
    %v285 = vunpack.c.l.s4 1983009808
    %v286 = vunpack.c.0.s8 %v285
    %v287 = vperm.slane %v281, %v286
    %v289 = vunpack.c.l.s4 1983009808
    %v290 = vunpack.c.0.s8 %v289
    %v291 = vperm.slane %v283, %v290
    %v292 = vrot.slane %v287, 4
    %v293 = vsel %vm48, %v292, %v275
    %v294 = vrot.slane %v275, 4
    %v295 = vsel %vm48, %v287, %v294
    %v297 = vunpack.c.l.s4 1934713408
    %v298 = vunpack.c.0.s8 %v297
    %v299 = vperm.slane %v293, %v298
    %v301 = vunpack.c.l.s4 1934713408
    %v302 = vunpack.c.0.s8 %v301
    %v303 = vperm.slane %v295, %v302
    %v304 = vrot.slane %v291, 4
    %v305 = vsel %vm48, %v304, %v279
    %v306 = vrot.slane %v279, 4
    %v307 = vsel %vm48, %v291, %v306
    %v309 = vunpack.c.l.s4 1934713408
    %v310 = vunpack.c.0.s8 %v309
    %v311 = vperm.slane %v305, %v310
    %v313 = vunpack.c.l.s4 1934713408
    %v314 = vunpack.c.0.s8 %v313
    %v315 = vperm.slane %v307, %v314
    %v316 = vrot.slane %v299, 4
    %v317 = vsel %vm48, 0.0, %v316
    %v318 = vrot.slane %v303, 4
    %v319 = vsel %vm48, 0.0, %v318
    %v320 = vrot.slane %v311, 4
    %v321 = vsel %vm48, 0.0, %v320
    %v322 = vrot.slane %v315, 4
    %v323 = vsel %vm48, 0.0, %v322
    %v324 = vrot.slane %v265, 4
    %v325 = vsel %vm48, %v324, %v261
    %v326 = vrot.slane %v261, 4
    %v327 = vsel %vm48, %v265, %v326
    %v329 = vunpack.c.l.s4 1983009808
    %v330 = vunpack.c.0.s8 %v329
    %v331 = vperm.slane %v325, %v330
    %v333 = vunpack.c.l.s4 1983009808
    %v334 = vunpack.c.0.s8 %v333
    %v335 = vperm.slane %v327, %v334
    %v336 = vrot.slane %v267, 4
    %v337 = vsel %vm48, %v336, %v263
    %v338 = vrot.slane %v263, 4
    %v339 = vsel %vm48, %v267, %v338
    %v341 = vunpack.c.l.s4 1983009808
    %v342 = vunpack.c.0.s8 %v341
    %v343 = vperm.slane %v337, %v342
    %v345 = vunpack.c.l.s4 1983009808
    %v346 = vunpack.c.0.s8 %v345
    %v347 = vperm.slane %v339, %v346
    %v348 = vrot.slane %v343, 4
    %v349 = vsel %vm48, %v348, %v331
    %v350 = vrot.slane %v331, 4
    %v351 = vsel %vm48, %v343, %v350
    %v353 = vunpack.c.l.s4 1934713408
    %v354 = vunpack.c.0.s8 %v353
    %v355 = vperm.slane %v349, %v354
    %v357 = vunpack.c.l.s4 1934713408
    %v358 = vunpack.c.0.s8 %v357
    %v359 = vperm.slane %v351, %v358
    %v360 = vrot.slane %v347, 4
    %v361 = vsel %vm48, %v360, %v335
    %v362 = vrot.slane %v335, 4
    %v363 = vsel %vm48, %v347, %v362
    %v365 = vunpack.c.l.s4 1934713408
    %v366 = vunpack.c.0.s8 %v365
    %v367 = vperm.slane %v361, %v366
    %v369 = vunpack.c.l.s4 1934713408
    %v370 = vunpack.c.0.s8 %v369
    %v371 = vperm.slane %v363, %v370
    %v372 = vrot.slane %v355, 4
    %v373 = vsel %vm48, 0.0, %v372
    %v374 = vrot.slane %v359, 4
    %v375 = vsel %vm48, 0.0, %v374
    %v376 = vrot.slane %v367, 4
    %v377 = vsel %vm48, 0.0, %v376
    %v378 = vrot.slane %v371, 4
    %v379 = vsel %vm48, 0.0, %v378
    %v380 = vsel %vm48, %v318, %v299
    %v382 = vunpack.c.l.s4 1983009808
    %v383 = vunpack.c.0.s8 %v382
    %v384 = vperm.slane %v380, %v383
    %v385 = vrot.slane %v319, 4
    %v386 = vsel %vm48, %v385, %v317
    %v388 = vunpack.c.l.s4 1983009808
    %v389 = vunpack.c.0.s8 %v388
    %v390 = vperm.slane %v386, %v389
    %v391 = vsel %vm48, %v322, %v311
    %v393 = vunpack.c.l.s4 1983009808
    %v394 = vunpack.c.0.s8 %v393
    %v395 = vperm.slane %v391, %v394
    %v396 = vrot.slane %v323, 4
    %v397 = vsel %vm48, %v396, %v321
    %v399 = vunpack.c.l.s4 1983009808
    %v400 = vunpack.c.0.s8 %v399
    %v401 = vperm.slane %v397, %v400
    %v402 = vrot.slane %v390, 4
    %v403 = vsel %vm48, %v402, %v384
    %v404 = vrot.slane %v384, 4
    %v405 = vsel %vm48, %v390, %v404
    %v407 = vunpack.c.l.s4 1934713408
    %v408 = vunpack.c.0.s8 %v407
    %v409 = vperm.slane %v403, %v408
    %v411 = vunpack.c.l.s4 1934713408
    %v412 = vunpack.c.0.s8 %v411
    %v413 = vperm.slane %v405, %v412
    %v414 = vrot.slane %v401, 4
    %v415 = vsel %vm48, %v414, %v395
    %v416 = vrot.slane %v395, 4
    %v417 = vsel %vm48, %v401, %v416
    %v419 = vunpack.c.l.s4 1934713408
    %v420 = vunpack.c.0.s8 %v419
    %v421 = vperm.slane %v415, %v420
    %v423 = vunpack.c.l.s4 1934713408
    %v424 = vunpack.c.0.s8 %v423
    %v425 = vperm.slane %v417, %v424
    %v426 = vrot.slane %v421, 4
    %v427 = vsel %vm48, %v426, %v409
    %v428 = vrot.slane %v409, 4
    %v429 = vsel %vm48, %v421, %v428
    %v430 = vrot.slane %v425, 4
    %v431 = vsel %vm48, %v430, %v413
    %v432 = vrot.slane %v413, 4
    %v433 = vsel %vm48, %v425, %v432
    %v434 = vsel %vm48, %v374, %v355
    %v436 = vunpack.c.l.s4 1983009808
    %v437 = vunpack.c.0.s8 %v436
    %v438 = vperm.slane %v434, %v437
    %v439 = vrot.slane %v375, 4
    %v440 = vsel %vm48, %v439, %v373
    %v442 = vunpack.c.l.s4 1983009808
    %v443 = vunpack.c.0.s8 %v442
    %v444 = vperm.slane %v440, %v443
    %v445 = vsel %vm48, %v378, %v367
    %v447 = vunpack.c.l.s4 1983009808
    %v448 = vunpack.c.0.s8 %v447
    %v449 = vperm.slane %v445, %v448
    %v450 = vrot.slane %v379, 4
    %v451 = vsel %vm48, %v450, %v377
    %v453 = vunpack.c.l.s4 1983009808
    %v454 = vunpack.c.0.s8 %v453
    %v455 = vperm.slane %v451, %v454
    %v456 = vrot.slane %v444, 4
    %v457 = vsel %vm48, %v456, %v438
    %v458 = vrot.slane %v438, 4
    %v459 = vsel %vm48, %v444, %v458
    %v461 = vunpack.c.l.s4 1934713408
    %v462 = vunpack.c.0.s8 %v461
    %v463 = vperm.slane %v457, %v462
    %v465 = vunpack.c.l.s4 1934713408
    %v466 = vunpack.c.0.s8 %v465
    %v467 = vperm.slane %v459, %v466
    %v468 = vrot.slane %v455, 4
    %v469 = vsel %vm48, %v468, %v449
    %v470 = vrot.slane %v449, 4
    %v471 = vsel %vm48, %v455, %v470
    %v473 = vunpack.c.l.s4 1934713408
    %v474 = vunpack.c.0.s8 %v473
    %v475 = vperm.slane %v469, %v474
    %v477 = vunpack.c.l.s4 1934713408
    %v478 = vunpack.c.0.s8 %v477
    %v479 = vperm.slane %v471, %v478
    %v480 = vrot.slane %v475, 4
    %v481 = vsel %vm48, %v480, %v463
    %v482 = vrot.slane %v463, 4
    %v483 = vsel %vm48, %v475, %v482
    %v484 = vrot.slane %v479, 4
    %v485 = vsel %vm48, %v484, %v467
    %v486 = vrot.slane %v467, 4
    %v487 = vsel %vm48, %v479, %v486
    %490 = vrot.lane.b32.xlu0 %v429, 32
    %v491 = vpop.permute.xlu0 %490
    %492 = vrot.lane.b32.xlu0 %v483, 32
    %v493 = vpop.permute.xlu0 %492
    %498 = vrot.lane.b32.xlu0 %v431, 64
    %v499 = vpop.permute.xlu0 %498
    %500 = vrot.lane.b32.xlu0 %v485, 64
    %v501 = vpop.permute.xlu0 %500
    %506 = vrot.lane.b32.xlu0 %v433, 96
    %v507 = vpop.permute.xlu0 %506
    %508 = vrot.lane.b32.xlu0 %v487, 96
    %v509 = vpop.permute.xlu0 %508
    %vm512 = vcmask 261120
    %v513 = vsel %vm512, %v427, %v491
    %v514 = vsel %vm512, %v481, %v493
    %vm515 = vcmask 523264
    %v516 = vsel %vm515, %v513, %v499
    %v517 = vsel %vm515, %v514, %v501
    %vm518 = vcmask 785408
    %v519 = vsel %vm518, %v516, %v507
    %v520 = vsel %vm518, %v517, %v509
    %521 = vst [vmem:[#allocation5] sm:$0xff] %v519
    %522 = vst [vmem:[#allocation5 + $0x8] sm:$0xff] %v520
    // Predicated region
    $region10: #{tpu_custom_call.1} parent=1 // pred_check
      _
    $region11: #{tpu_custom_call.1} parent=1 // pred_check_branch
      %524 = sbr.rel (0) target = $region13
    $region12: #{tpu_custom_call.1} parent=1 // pred_region
      %526 = vsyncadd [#allocation4], 0
      %s527 = sshll.u32 [#allocation5], 4
      %s528 = int_to_ptr.vmem [resolvable:$true] %s527
      %s529 = sshll.u32 %s1, 4
      %s530 = int_to_ptr.hbm [resolvable:$true] %s529
      %535 = dma.vmem_to_hbm [thread:$0]  %s528, 256, %s530, [#allocation4], 128, 128, 8
    $region13: #{tpu_custom_call.1} parent=1 // pred_fallthru
      _
    // Predicated region
    $region14: #{tpu_custom_call.1} parent=1 // pred_check
      _
    $region15: #{tpu_custom_call.1} parent=1 // pred_check_branch
      %537 = sbr.rel (0) target = $region17
    $region16: #{tpu_custom_call.1} parent=1 // pred_region
      %539 = dma.done [#allocation4], 256
    $region17: #{tpu_custom_call.1} parent=1 // pred_fallthru
      _
    %540 = vsyncpa [#allocation3], 1
    %541 = vsyncpa [#allocation4], 1

// kernel: tpu_custom_call.1
$region0: #{tpu_custom_call.1}
  #allocation0 [shape = 'u32[]', space=smem, size = 0x4, offset = 0x4, fixed_abs, tag = 'smem constant byte address 0x4 - core index']
  #allocation1 [shape = 'u32[72,128]{1,0:T(1,128)}', space=vmem, size = 0x9000, scoped, tag = 'internal scratch']
  %s0 = inlined_call_operand.hbm [shape: f32[2,8,128], index: 0, kind: input, shape index: {}]
  %s1 = inlined_call_operand.hbm [shape: f32[1,8,128], index: 1, kind: input, shape index: {}]
  %s2 = inlined_call_operand.vmem [shape: f32[1,128], index: 2, kind: input, shape index: {}]
  %s3 = inlined_call_operand.vmem [shape: f32[1,128], index: 3, kind: input, shape index: {}]
  %s4 = inlined_call_operand.hbm [shape: bf16[128,128], index: 4, kind: input, shape index: {}]
  %s5 = inlined_call_operand.vmem [shape: f32[1,128], index: 5, kind: input, shape index: {}]
  %s6 = inlined_call_operand.hbm [shape: bf16[128,128], index: 6, kind: input, shape index: {}]
  %s7 = inlined_call_operand.hbm [shape: f32[1,128], index: 7, kind: input, shape index: {}]
  %s8 = inlined_call_operand.hbm [shape: bf16[128,128], index: 8, kind: input, shape index: {}]
  %s9 = inlined_call_operand.vmem [shape: f32[1,128], index: 9, kind: input, shape index: {}]
  %s10 = inlined_call_operand.hbm [shape: bf16[128,128], index: 10, kind: input, shape index: {}]
  %s11 = inlined_call_operand.vmem [shape: f32[1,128], index: 11, kind: input, shape index: {}]
  %s12 = inlined_call_operand.vmem [shape: f32[1,128], index: 12, kind: input, shape index: {}]
  %s13 = inlined_call_operand.vmem [shape: f32[1,128], index: 13, kind: input, shape index: {}]
  %s14 = inlined_call_operand.hbm [shape: bf16[128,512], index: 14, kind: input, shape index: {}]
  %s15 = inlined_call_operand.vmem [shape: f32[1,512], index: 15, kind: input, shape index: {}]
  %s16 = inlined_call_operand.hbm [shape: bf16[512,128], index: 16, kind: input, shape index: {}]
  %s17 = inlined_call_operand.vmem [shape: f32[1,128], index: 17, kind: input, shape index: {}]
  %s18 = inlined_call_operand.hbm [shape: bf16[2,8,128], index: 18, kind: output, shape index: {}]
  %s19 = sld [smem:[#allocation0]]
  $region118: #{tpu_custom_call.1} parent=0
    _
  %s21 = ssub.s32 1, %s19
  %s22 = scalar_select 0, %s21, %s19
  $region1: #{tpu_custom_call.1} parent=0
    #allocation2 [shape = 'u8[8192]{0}', space=vmem, size = 0x2000, scoped, tag = 'input window, operand 0, single buffered']
    #allocation3 [shape = 's32[1]{0}', space=sflag, size = 0x4, scoped, tag = 'scoped memory for tpu_custom_call.1']
    #allocation4 [shape = 's32[1]{0}', space=sflag, size = 0x4, scoped, tag = 'scoped memory for tpu_custom_call.1']
    #allocation5 [shape = 'u8[4096]{0}', space=vmem, size = 0x1000, scoped, tag = 'input window, operand 1, single buffered']
    #allocation6 [shape = 's32[1]{0}', space=sflag, size = 0x4, scoped, tag = 'scoped memory for tpu_custom_call.1']
    #allocation7 [shape = 'u8[32768]{0}', space=vmem, size = 0x8000, scoped, tag = 'input window, operand 4, single buffered']
    #allocation8 [shape = 'u8[32768]{0}', space=vmem, size = 0x8000, scoped, tag = 'input window, operand 6, single buffered']
    #allocation9 [shape = 's32[1]{0}', space=sflag, size = 0x4, scoped, tag = 'scoped memory for tpu_custom_call.1']
    #allocation10 [shape = 'u8[512]{0}', space=vmem, size = 0x400, scoped, tag = 'input window, operand 7, single buffered']
    #allocation11 [shape = 'u8[32768]{0}', space=vmem, size = 0x8000, scoped, tag = 'input window, operand 8, single buffered']
    #allocation12 [shape = 's32[1]{0}', space=sflag, size = 0x4, scoped, tag = 'scoped memory for tpu_custom_call.1']
    #allocation13 [shape = 'u8[32768]{0}', space=vmem, size = 0x8000, scoped, tag = 'input window, operand 10, single buffered']
    #allocation14 [shape = 'u8[131072]{0}', space=vmem, size = 0x20000, scoped, tag = 'input window, operand 14, single buffered']
    #allocation15 [shape = 's32[1]{0}', space=sflag, size = 0x4, scoped, tag = 'scoped memory for tpu_custom_call.1']
    #allocation16 [shape = 'u8[131072]{0}', space=vmem, size = 0x20000, scoped, tag = 'input window, operand 16, single buffered']
    #allocation17 [shape = 'u8[4096]{0}', space=vmem, size = 0x1000, scoped, tag = 'output window, operand 0, single buffered']
    %23 = vsyncpa [#allocation3], 0
    %24 = vsyncpa [#allocation6], 0
    %25 = vsyncpa [#allocation9], 0
    %26 = vsyncpa [#allocation12], 0
    %27 = vsyncpa [#allocation15], 0
    %28 = vsyncpa [#allocation4], 0
    // Predicated region
    $region2: #{tpu_custom_call.1} parent=1 // pred_check
      _
    $region3: #{tpu_custom_call.1} parent=1 // pred_check_branch
      %30 = sbr.rel (0) target = $region5
    $region4: #{tpu_custom_call.1} parent=1 // pred_region
      %32 = vsyncadd [#allocation3], 0
      %s33 = sshll.u32 %s0, 4
      %s34 = int_to_ptr.hbm [resolvable:$true] %s33
      %s35 = sshll.u32 [#allocation2], 4
      %s36 = int_to_ptr.vmem [resolvable:$true] %s35
      %41 = dma.hbm_to_vmem [thread:$0]  %s34, 256, %s36, [#allocation3], 128, 128, 8
    $region5: #{tpu_custom_call.1} parent=1 // pred_fallthru
      _
    // Predicated region
    $region6: #{tpu_custom_call.1} parent=1 // pred_check
      _
    $region7: #{tpu_custom_call.1} parent=1 // pred_check_branch
      %43 = sbr.rel (0) target = $region9
    $region8: #{tpu_custom_call.1} parent=1 // pred_region
      %45 = vsyncadd [#allocation6], 0
      %s47 = sshll.u32 %s1, 4
      %s48 = int_to_ptr.hbm [resolvable:$true] %s47
      %s49 = sshll.u32 [#allocation5], 4
      %s50 = int_to_ptr.vmem [resolvable:$true] %s49
      %52 = dma.hbm_to_vmem [thread:$0]  %s48, 128, %s50, [#allocation6]
    $region9: #{tpu_custom_call.1} parent=1 // pred_fallthru
      _
    // Predicated region
    $region10: #{tpu_custom_call.1} parent=1 // pred_check
      _
    $region11: #{tpu_custom_call.1} parent=1 // pred_check_branch
      %54 = sbr.rel (0) target = $region13
    $region12: #{tpu_custom_call.1} parent=1 // pred_region
      _
    $region13: #{tpu_custom_call.1} parent=1 // pred_fallthru
      _
    // Predicated region
    $region14: #{tpu_custom_call.1} parent=1 // pred_check
      _
    $region15: #{tpu_custom_call.1} parent=1 // pred_check_branch
      %56 = sbr.rel (0) target = $region17
    $region16: #{tpu_custom_call.1} parent=1 // pred_region
      _
    $region17: #{tpu_custom_call.1} parent=1 // pred_fallthru
      _
    // Predicated region
    $region18: #{tpu_custom_call.1} parent=1 // pred_check
      _
    $region19: #{tpu_custom_call.1} parent=1 // pred_check_branch
      %58 = sbr.rel (0) target = $region21
    $region20: #{tpu_custom_call.1} parent=1 // pred_region
      %60 = vsyncadd [#allocation6], 0
      %s61 = sshll.u32 %s4, 4
      %s62 = int_to_ptr.hbm [resolvable:$true] %s61
      %s63 = sshll.u32 [#allocation7], 4
      %s64 = int_to_ptr.vmem [resolvable:$true] %s63
      %69 = dma.hbm_to_vmem [thread:$0]  %s62, 1024, %s64, [#allocation6], 64, 64, 4
    $region21: #{tpu_custom_call.1} parent=1 // pred_fallthru
      _
    // Predicated region
    $region22: #{tpu_custom_call.1} parent=1 // pred_check
      _
    $region23: #{tpu_custom_call.1} parent=1 // pred_check_branch
      %71 = sbr.rel (0) target = $region25
    $region24: #{tpu_custom_call.1} parent=1 // pred_region
      _
    $region25: #{tpu_custom_call.1} parent=1 // pred_fallthru
      _
    // Predicated region
    $region26: #{tpu_custom_call.1} parent=1 // pred_check
      _
    $region27: #{tpu_custom_call.1} parent=1 // pred_check_branch
      %73 = sbr.rel (0) target = $region29
    $region28: #{tpu_custom_call.1} parent=1 // pred_region
      %75 = vsyncadd [#allocation9], 0
      %s76 = sshll.u32 %s6, 4
      %s77 = int_to_ptr.hbm [resolvable:$true] %s76
      %s78 = sshll.u32 [#allocation8], 4
      %s79 = int_to_ptr.vmem [resolvable:$true] %s78
      %84 = dma.hbm_to_vmem [thread:$0]  %s77, 1024, %s79, [#allocation9], 64, 64, 4
    $region29: #{tpu_custom_call.1} parent=1 // pred_fallthru
      _
    // Predicated region
    $region30: #{tpu_custom_call.1} parent=1 // pred_check
      _
    $region31: #{tpu_custom_call.1} parent=1 // pred_check_branch
      %86 = sbr.rel (0) target = $region33
    $region32: #{tpu_custom_call.1} parent=1 // pred_region
      %88 = vsyncadd [#allocation9], 0
      %s90 = sshll.u32 %s7, 4
      %s91 = int_to_ptr.hbm [resolvable:$true] %s90
      %s92 = sshll.u32 [#allocation10], 4
      %s93 = int_to_ptr.vmem [resolvable:$true] %s92
      %95 = dma.hbm_to_vmem [thread:$0]  %s91, 16, %s93, [#allocation9]
    $region33: #{tpu_custom_call.1} parent=1 // pred_fallthru
      _
    // Predicated region
    $region34: #{tpu_custom_call.1} parent=1 // pred_check
      _
    $region35: #{tpu_custom_call.1} parent=1 // pred_check_branch
      %97 = sbr.rel (0) target = $region37
    $region36: #{tpu_custom_call.1} parent=1 // pred_region
      %99 = vsyncadd [#allocation12], 0
      %s100 = sshll.u32 %s8, 4
      %s101 = int_to_ptr.hbm [resolvable:$true] %s100
      %s102 = sshll.u32 [#allocation11], 4
      %s103 = int_to_ptr.vmem [resolvable:$true] %s102
      %108 = dma.hbm_to_vmem [thread:$0]  %s101, 1024, %s103, [#allocation12], 64, 64, 4
    $region37: #{tpu_custom_call.1} parent=1 // pred_fallthru
      _
    // Predicated region
    $region38: #{tpu_custom_call.1} parent=1 // pred_check
      _
    $region39: #{tpu_custom_call.1} parent=1 // pred_check_branch
      %110 = sbr.rel (0) target = $region41
    $region40: #{tpu_custom_call.1} parent=1 // pred_region
      _
    $region41: #{tpu_custom_call.1} parent=1 // pred_fallthru
      _
    // Predicated region
    $region42: #{tpu_custom_call.1} parent=1 // pred_check
      _
    $region43: #{tpu_custom_call.1} parent=1 // pred_check_branch
      %112 = sbr.rel (0) target = $region45
    $region44: #{tpu_custom_call.1} parent=1 // pred_region
      %114 = vsyncadd [#allocation12], 0
      %s115 = sshll.u32 %s10, 4
      %s116 = int_to_ptr.hbm [resolvable:$true] %s115
      %s117 = sshll.u32 [#allocation13], 4
      %s118 = int_to_ptr.vmem [resolvable:$true] %s117
      %123 = dma.hbm_to_vmem [thread:$0]  %s116, 1024, %s118, [#allocation12], 64, 64, 4
    $region45: #{tpu_custom_call.1} parent=1 // pred_fallthru
      _
    // Predicated region
    $region46: #{tpu_custom_call.1} parent=1 // pred_check
      _
    $region47: #{tpu_custom_call.1} parent=1 // pred_check_branch
      %125 = sbr.rel (0) target = $region49
    $region48: #{tpu_custom_call.1} parent=1 // pred_region
      _
    $region49: #{tpu_custom_call.1} parent=1 // pred_fallthru
      _
    // Predicated region
    $region50: #{tpu_custom_call.1} parent=1 // pred_check
      _
    $region51: #{tpu_custom_call.1} parent=1 // pred_check_branch
      %127 = sbr.rel (0) target = $region53
    $region52: #{tpu_custom_call.1} parent=1 // pred_region
      _
    $region53: #{tpu_custom_call.1} parent=1 // pred_fallthru
      _
    // Predicated region
    $region54: #{tpu_custom_call.1} parent=1 // pred_check
      _
    $region55: #{tpu_custom_call.1} parent=1 // pred_check_branch
      %129 = sbr.rel (0) target = $region57
    $region56: #{tpu_custom_call.1} parent=1 // pred_region
      _
    $region57: #{tpu_custom_call.1} parent=1 // pred_fallthru
      _
    // Predicated region
    $region58: #{tpu_custom_call.1} parent=1 // pred_check
      _
    $region59: #{tpu_custom_call.1} parent=1 // pred_check_branch
      %131 = sbr.rel (0) target = $region61
    $region60: #{tpu_custom_call.1} parent=1 // pred_region
      %133 = vsyncadd [#allocation15], 0
      %s134 = sshll.u32 %s14, 4
      %s135 = int_to_ptr.hbm [resolvable:$true] %s134
      %s136 = sshll.u32 [#allocation14], 4
      %s137 = int_to_ptr.vmem [resolvable:$true] %s136
      %142 = dma.hbm_to_vmem [thread:$0]  %s135, 4096, %s137, [#allocation15], 256, 256, 16
    $region61: #{tpu_custom_call.1} parent=1 // pred_fallthru
      _
    // Predicated region
    $region62: #{tpu_custom_call.1} parent=1 // pred_check
      _
    $region63: #{tpu_custom_call.1} parent=1 // pred_check_branch
      %144 = sbr.rel (0) target = $region65
    $region64: #{tpu_custom_call.1} parent=1 // pred_region
      _
    $region65: #{tpu_custom_call.1} parent=1 // pred_fallthru
      _
    // Predicated region
    $region66: #{tpu_custom_call.1} parent=1 // pred_check
      _
    $region67: #{tpu_custom_call.1} parent=1 // pred_check_branch
      %146 = sbr.rel (0) target = $region69
    $region68: #{tpu_custom_call.1} parent=1 // pred_region
      %148 = vsyncadd [#allocation15], 0
      %s149 = sshll.u32 %s16, 4
      %s150 = int_to_ptr.hbm [resolvable:$true] %s149
      %s151 = sshll.u32 [#allocation16], 4
      %s152 = int_to_ptr.vmem [resolvable:$true] %s151
      %157 = dma.hbm_to_vmem [thread:$0]  %s150, 4096, %s152, [#allocation15], 64, 64, 4
    $region69: #{tpu_custom_call.1} parent=1 // pred_fallthru
      _
    // Predicated region
    $region70: #{tpu_custom_call.1} parent=1 // pred_check
      _
    $region71: #{tpu_custom_call.1} parent=1 // pred_check_branch
      %159 = sbr.rel (0) target = $region73
    $region72: #{tpu_custom_call.1} parent=1 // pred_region
      _
    $region73: #{tpu_custom_call.1} parent=1 // pred_fallthru
      _
    // Predicated region
    $region74: #{tpu_custom_call.1} parent=1 // pred_check
      _
    $region75: #{tpu_custom_call.1} parent=1 // pred_check_branch
      %161 = sbr.rel (0) target = $region77
    $region76: #{tpu_custom_call.1} parent=1 // pred_region
      %163 = dma.done [#allocation3], 256
    $region77: #{tpu_custom_call.1} parent=1 // pred_fallthru
      _
    // Predicated region
    $region78: #{tpu_custom_call.1} parent=1 // pred_check
      _
    $region79: #{tpu_custom_call.1} parent=1 // pred_check_branch
      %165 = sbr.rel (0) target = $region81
    $region80: #{tpu_custom_call.1} parent=1 // pred_region
      %167 = dma.done [#allocation6], 128
    $region81: #{tpu_custom_call.1} parent=1 // pred_fallthru
      _
    // Predicated region
    $region82: #{tpu_custom_call.1} parent=1 // pred_check
      _
    $region83: #{tpu_custom_call.1} parent=1 // pred_check_branch
      %169 = sbr.rel (0) target = $region85
    $region84: #{tpu_custom_call.1} parent=1 // pred_region
      %171 = dma.done [#allocation6], 1024
    $region85: #{tpu_custom_call.1} parent=1 // pred_fallthru
      _
    // Predicated region
    $region86: #{tpu_custom_call.1} parent=1 // pred_check
      _
    $region87: #{tpu_custom_call.1} parent=1 // pred_check_branch
      %173 = sbr.rel (0) target = $region89
    $region88: #{tpu_custom_call.1} parent=1 // pred_region
      %175 = dma.done [#allocation9], 1024
    $region89: #{tpu_custom_call.1} parent=1 // pred_fallthru
      _
    // Predicated region
    $region90: #{tpu_custom_call.1} parent=1 // pred_check
      _
    $region91: #{tpu_custom_call.1} parent=1 // pred_check_branch
      %177 = sbr.rel (0) target = $region93
    $region92: #{tpu_custom_call.1} parent=1 // pred_region
      %179 = dma.done [#allocation9], 16
    $region93: #{tpu_custom_call.1} parent=1 // pred_fallthru
      _
    // Predicated region
    $region94: #{tpu_custom_call.1} parent=1 // pred_check
      _
    $region95: #{tpu_custom_call.1} parent=1 // pred_check_branch
      %181 = sbr.rel (0) target = $region97
    $region96: #{tpu_custom_call.1} parent=1 // pred_region
      %183 = dma.done [#allocation12], 1024
    $region97: #{tpu_custom_call.1} parent=1 // pred_fallthru
      _
    // Predicated region
    $region98: #{tpu_custom_call.1} parent=1 // pred_check
      _
    $region99: #{tpu_custom_call.1} parent=1 // pred_check_branch
      %185 = sbr.rel (0) target = $region101
    $region100: #{tpu_custom_call.1} parent=1 // pred_region
      %187 = dma.done [#allocation12], 1024
    $region101: #{tpu_custom_call.1} parent=1 // pred_fallthru
      _
    // Predicated region
    $region102: #{tpu_custom_call.1} parent=1 // pred_check
      _
    $region103: #{tpu_custom_call.1} parent=1 // pred_check_branch
      %189 = sbr.rel (0) target = $region105
    $region104: #{tpu_custom_call.1} parent=1 // pred_region
      %191 = dma.done [#allocation15], 4096
    $region105: #{tpu_custom_call.1} parent=1 // pred_fallthru
      _
    // Predicated region
    $region106: #{tpu_custom_call.1} parent=1 // pred_check
      _
    $region107: #{tpu_custom_call.1} parent=1 // pred_check_branch
      %193 = sbr.rel (0) target = $region109
    $region108: #{tpu_custom_call.1} parent=1 // pred_region
      %195 = dma.done [#allocation15], 4096
    $region109: #{tpu_custom_call.1} parent=1 // pred_fallthru
      _
    %v197 = vld [vmem:[#allocation2] sm:$0xff]
    %v198 = vld [vmem:[#allocation2 + $0x8] sm:$0xff]
    %v199 = vld [vmem:[#allocation5] sm:$0xff]
    %v200 = vadd.f32 %v197, %v199
    %v201 = vadd.f32 %v198, %v199
    %v202 = vld [vmem:[%s2] sm:$0x1]
    %v203 = vld [vmem:[%s3] sm:$0x1]
    %204 = vadd.xlane.f32.xlu0 %v200
    %v205 = vpop.xlane.xlu0 %204
    %206 = vadd.xlane.f32.xlu0 %v201
    %v207 = vpop.xlane.xlu0 %206
    %v208 = vrcp.pop 128.0
    %v209 = vmul.f32 128.0, %v208
    %v210 = vsub.f32 1.0, %v209
    %v211 = vmul.f32 %v208, %v210
    %v212 = vadd.f32 %v208, %v211
    %vm213 = vweird.f32 %v208
    %v214 = vsel %vm213, %v208, %v212
    %v215 = vmul.f32 %v205, %v214
    %v216 = vmul.f32 %v207, %v214
    %v217 = vsub.f32 %v200, %v215
    %v218 = vsub.f32 %v201, %v216
    %v219 = vmul.f32 %v217, %v217
    %v220 = vmul.f32 %v218, %v218
    %221 = vadd.xlane.f32.xlu0 %v219
    %v222 = vpop.xlane.xlu0 %221
    %223 = vadd.xlane.f32.xlu0 %v220
    %v224 = vpop.xlane.xlu0 %223
    %v225 = vmul.f32 %v222, %v214
    %v226 = vmul.f32 %v224, %v214
    %v227 = vadd.f32 %v225, 1e-06
    %v228 = vadd.f32 %v226, 1e-06
    %v229 = vrsqrt.pop %v227
    %v230 = vmul.f32 %v229, %v227
    %v231 = vmul.f32 %v230, %v229
    %v232 = vmul.f32 0.5, %v231
    %v233 = vsub.f32 1.5, %v232
    %v234 = vmul.f32 %v229, %v233
    %vm235 = vweird.f32 %v227
    %vm236 = vweird.f32 %v229
    %vm237 = vmor %vm235, %vm236
    %v238 = vsel %vm237, %v229, %v234
    %v239 = vrsqrt.pop %v228
    %v240 = vmul.f32 %v239, %v228
    %v241 = vmul.f32 %v240, %v239
    %v242 = vmul.f32 0.5, %v241
    %v243 = vsub.f32 1.5, %v242
    %v244 = vmul.f32 %v239, %v243
    %vm245 = vweird.f32 %v228
    %vm246 = vweird.f32 %v239
    %vm247 = vmor %vm245, %vm246
    %v248 = vsel %vm247, %v239, %v244
    %v249 = vmul.f32 %v217, %v238
    %v250 = vmul.f32 %v218, %v248
    %v252 = vperm.slane %v202, 0
    %v254 = vmul.f32 %v249, %v252
    %v255 = vmul.f32 %v250, %v252
    %v257 = vperm.slane %v203, 0
    %v259 = vadd.f32 %v254, %v257
    %v260 = vadd.f32 %v255, %v257
    %v261 = vpack.c.bf16 %v260, %v259
    %v262 = vld [vmem:[#allocation7] sm:$0xf]
    %v263 = vld [vmem:[#allocation7 + $0x4] sm:$0xf]
    %v264 = vld [vmem:[#allocation7 + $0x8] sm:$0xf]
    %v265 = vld [vmem:[#allocation7 + $0xc] sm:$0xf]
    %v266 = vld [vmem:[#allocation7 + $0x10] sm:$0xf]
    %v267 = vld [vmem:[#allocation7 + $0x14] sm:$0xf]
    %v268 = vld [vmem:[#allocation7 + $0x18] sm:$0xf]
    %v269 = vld [vmem:[#allocation7 + $0x1c] sm:$0xf]
    %v270 = vld [vmem:[#allocation7 + $0x20] sm:$0xf]
    %v271 = vld [vmem:[#allocation7 + $0x24] sm:$0xf]
    %v272 = vld [vmem:[#allocation7 + $0x28] sm:$0xf]
    %v273 = vld [vmem:[#allocation7 + $0x2c] sm:$0xf]
    %v274 = vld [vmem:[#allocation7 + $0x30] sm:$0xf]
    %v275 = vld [vmem:[#allocation7 + $0x34] sm:$0xf]
    %v276 = vld [vmem:[#allocation7 + $0x38] sm:$0xf]
    %v277 = vld [vmem:[#allocation7 + $0x3c] sm:$0xf]
    %v278 = vld [vmem:[%s5] sm:$0x1]
    %v280 = vperm.slane %v278, 0
    %v298 = vunpack.c.l.b16 %v262
    %v299 = vunpack.c.l.b16 %v263
    %v300 = vunpack.c.l.b16 %v264
    %v301 = vunpack.c.l.b16 %v265
    %v302 = vunpack.c.l.b16 %v266
    %v303 = vunpack.c.l.b16 %v267
    %v304 = vunpack.c.l.b16 %v268
    %v305 = vunpack.c.l.b16 %v269
    %v306 = vunpack.c.l.b16 %v270
    %v307 = vunpack.c.l.b16 %v271
    %v308 = vunpack.c.l.b16 %v272
    %v309 = vunpack.c.l.b16 %v273
    %v310 = vunpack.c.l.b16 %v274
    %v311 = vunpack.c.l.b16 %v275
    %v312 = vunpack.c.l.b16 %v276
    %v313 = vunpack.c.l.b16 %v277
    %v314 = vpack.c.b16 %v299, %v298
    %v315 = vpack.c.b16 %v301, %v300
    %v316 = vpack.c.b16 %v303, %v302
    %v317 = vpack.c.b16 %v305, %v304
    %v318 = vpack.c.b16 %v307, %v306
    %v319 = vpack.c.b16 %v309, %v308
    %v320 = vpack.c.b16 %v311, %v310
    %v321 = vpack.c.b16 %v313, %v312
    %330 = vmatpush.bf16.msra.mxu0 %v321
    %331 = vmatpush.bf16.msra.mxu0 %v320
    %332 = vmatpush.bf16.msra.mxu0 %v319
    %333 = vmatpush.bf16.msra.mxu0 %v318
    %334 = vmatpush.bf16.msra.mxu0 %v317
    %335 = vmatpush.bf16.msra.mxu0 %v316
    %336 = vmatpush.bf16.msra.mxu0 %v315
    %337 = vmatpush.bf16.msra.mxu0 %v314
    %338 = vmatmul.bf16.gmra.mxu0 %v261
    %v339 = vpop.f32.mrf.mxu0
    %v340 = vadd.f32 %v280, %v339
    %v341 = vpop.f32.mrf.mxu0
    %v342 = vadd.f32 %v280, %v341
    %343 = vdwg.mxu0
    %v344 = vld [vmem:[#allocation8] sm:$0xf]
    %v345 = vld [vmem:[#allocation8 + $0x4] sm:$0xf]
    %v346 = vld [vmem:[#allocation8 + $0x8] sm:$0xf]
    %v347 = vld [vmem:[#allocation8 + $0xc] sm:$0xf]
    %v348 = vld [vmem:[#allocation8 + $0x10] sm:$0xf]
    %v349 = vld [vmem:[#allocation8 + $0x14] sm:$0xf]
    %v350 = vld [vmem:[#allocation8 + $0x18] sm:$0xf]
    %v351 = vld [vmem:[#allocation8 + $0x1c] sm:$0xf]
    %v352 = vld [vmem:[#allocation8 + $0x20] sm:$0xf]
    %v353 = vld [vmem:[#allocation8 + $0x24] sm:$0xf]
    %v354 = vld [vmem:[#allocation8 + $0x28] sm:$0xf]
    %v355 = vld [vmem:[#allocation8 + $0x2c] sm:$0xf]
    %v356 = vld [vmem:[#allocation8 + $0x30] sm:$0xf]
    %v357 = vld [vmem:[#allocation8 + $0x34] sm:$0xf]
    %v358 = vld [vmem:[#allocation8 + $0x38] sm:$0xf]
    %v359 = vld [vmem:[#allocation8 + $0x3c] sm:$0xf]
    %v360 = vld [vmem:[#allocation10] sm:$0x1]
    %v362 = vperm.slane %v360, 0
    %v380 = vunpack.c.l.b16 %v344
    %v381 = vunpack.c.l.b16 %v345
    %v382 = vunpack.c.l.b16 %v346
    %v383 = vunpack.c.l.b16 %v347
    %v384 = vunpack.c.l.b16 %v348
    %v385 = vunpack.c.l.b16 %v349
    %v386 = vunpack.c.l.b16 %v350
    %v387 = vunpack.c.l.b16 %v351
    %v388 = vunpack.c.l.b16 %v352
    %v389 = vunpack.c.l.b16 %v353
    %v390 = vunpack.c.l.b16 %v354
    %v391 = vunpack.c.l.b16 %v355
    %v392 = vunpack.c.l.b16 %v356
    %v393 = vunpack.c.l.b16 %v357
    %v394 = vunpack.c.l.b16 %v358
    %v395 = vunpack.c.l.b16 %v359
    %v396 = vpack.c.b16 %v381, %v380
    %v397 = vpack.c.b16 %v383, %v382
    %v398 = vpack.c.b16 %v385, %v384
    %v399 = vpack.c.b16 %v387, %v386
    %v400 = vpack.c.b16 %v389, %v388
    %v401 = vpack.c.b16 %v391, %v390
    %v402 = vpack.c.b16 %v393, %v392
    %v403 = vpack.c.b16 %v395, %v394
    %412 = vmatpush.bf16.msra.mxu0 %v403
    %413 = vmatpush.bf16.msra.mxu0 %v402
    %414 = vmatpush.bf16.msra.mxu0 %v401
    %415 = vmatpush.bf16.msra.mxu0 %v400
    %416 = vmatpush.bf16.msra.mxu0 %v399
    %417 = vmatpush.bf16.msra.mxu0 %v398
    %418 = vmatpush.bf16.msra.mxu0 %v397
    %419 = vmatpush.bf16.msra.mxu0 %v396
    %420 = vmatmul.bf16.gmra.mxu0 %v261
    %v421 = vpop.f32.mrf.mxu0
    %v422 = vadd.f32 %v362, %v421
    %v423 = vpop.f32.mrf.mxu0
    %v424 = vadd.f32 %v362, %v423
    %425 = vdwg.mxu0
    %v426 = vld [vmem:[#allocation11] sm:$0xf]
    %v427 = vld [vmem:[#allocation11 + $0x4] sm:$0xf]
    %v428 = vld [vmem:[#allocation11 + $0x8] sm:$0xf]
    %v429 = vld [vmem:[#allocation11 + $0xc] sm:$0xf]
    %v430 = vld [vmem:[#allocation11 + $0x10] sm:$0xf]
    %v431 = vld [vmem:[#allocation11 + $0x14] sm:$0xf]
    %v432 = vld [vmem:[#allocation11 + $0x18] sm:$0xf]
    %v433 = vld [vmem:[#allocation11 + $0x1c] sm:$0xf]
    %v434 = vld [vmem:[#allocation11 + $0x20] sm:$0xf]
    %v435 = vld [vmem:[#allocation11 + $0x24] sm:$0xf]
    %v436 = vld [vmem:[#allocation11 + $0x28] sm:$0xf]
    %v437 = vld [vmem:[#allocation11 + $0x2c] sm:$0xf]
    %v438 = vld [vmem:[#allocation11 + $0x30] sm:$0xf]
    %v439 = vld [vmem:[#allocation11 + $0x34] sm:$0xf]
    %v440 = vld [vmem:[#allocation11 + $0x38] sm:$0xf]
    %v441 = vld [vmem:[#allocation11 + $0x3c] sm:$0xf]
    %v442 = vld [vmem:[%s9] sm:$0x1]
    %v444 = vperm.slane %v442, 0
    %v462 = vunpack.c.l.b16 %v426
    %v463 = vunpack.c.l.b16 %v427
    %v464 = vunpack.c.l.b16 %v428
    %v465 = vunpack.c.l.b16 %v429
    %v466 = vunpack.c.l.b16 %v430
    %v467 = vunpack.c.l.b16 %v431
    %v468 = vunpack.c.l.b16 %v432
    %v469 = vunpack.c.l.b16 %v433
    %v470 = vunpack.c.l.b16 %v434
    %v471 = vunpack.c.l.b16 %v435
    %v472 = vunpack.c.l.b16 %v436
    %v473 = vunpack.c.l.b16 %v437
    %v474 = vunpack.c.l.b16 %v438
    %v475 = vunpack.c.l.b16 %v439
    %v476 = vunpack.c.l.b16 %v440
    %v477 = vunpack.c.l.b16 %v441
    %v478 = vpack.c.b16 %v463, %v462
    %v479 = vpack.c.b16 %v465, %v464
    %v480 = vpack.c.b16 %v467, %v466
    %v481 = vpack.c.b16 %v469, %v468
    %v482 = vpack.c.b16 %v471, %v470
    %v483 = vpack.c.b16 %v473, %v472
    %v484 = vpack.c.b16 %v475, %v474
    %v485 = vpack.c.b16 %v477, %v476
    %494 = vmatpush.bf16.msra.mxu0 %v485
    %495 = vmatpush.bf16.msra.mxu0 %v484
    %496 = vmatpush.bf16.msra.mxu0 %v483
    %497 = vmatpush.bf16.msra.mxu0 %v482
    %498 = vmatpush.bf16.msra.mxu0 %v481
    %499 = vmatpush.bf16.msra.mxu0 %v480
    %500 = vmatpush.bf16.msra.mxu0 %v479
    %501 = vmatpush.bf16.msra.mxu0 %v478
    %502 = vmatmul.bf16.gmra.mxu0 %v261
    %v503 = vpop.f32.mrf.mxu0
    %v504 = vadd.f32 %v444, %v503
    %v505 = vpop.f32.mrf.mxu0
    %v506 = vadd.f32 %v444, %v505
    %507 = vdwg.mxu0
    %510 = vrot.lane.b32.xlu0 %v340, 96
    %v511 = vpop.permute.xlu0 %510
    %512 = vrot.lane.b32.xlu0 %v342, 96
    %v513 = vpop.permute.xlu0 %512
    %516 = vrot.lane.b32.xlu0 %v340, 64
    %v517 = vpop.permute.xlu0 %516
    %518 = vrot.lane.b32.xlu0 %v342, 64
    %v519 = vpop.permute.xlu0 %518
    %522 = vrot.lane.b32.xlu0 %v340, 32
    %v523 = vpop.permute.xlu0 %522
    %524 = vrot.lane.b32.xlu0 %v342, 32
    %v525 = vpop.permute.xlu0 %524
    %v528 = vpack.c.bf16 %v340, %v340
    %v529 = vpack.c.bf16 %v342, %v342
    %v530 = vpack.c.bf16 %v511, %v511
    %v531 = vpack.c.bf16 %v513, %v513
    %v532 = vpack.c.bf16 %v517, %v517
    %v533 = vpack.c.bf16 %v519, %v519
    %v534 = vpack.c.bf16 %v523, %v523
    %v535 = vpack.c.bf16 %v525, %v525
    %538 = vrot.lane.b32.xlu0 %v422, 96
    %v539 = vpop.permute.xlu0 %538
    %540 = vrot.lane.b32.xlu0 %v424, 96
    %v541 = vpop.permute.xlu0 %540
    %544 = vrot.lane.b32.xlu0 %v422, 64
    %v545 = vpop.permute.xlu0 %544
    %546 = vrot.lane.b32.xlu0 %v424, 64
    %v547 = vpop.permute.xlu0 %546
    %550 = vrot.lane.b32.xlu0 %v422, 32
    %v551 = vpop.permute.xlu0 %550
    %552 = vrot.lane.b32.xlu0 %v424, 32
    %v553 = vpop.permute.xlu0 %552
    %v556 = vpack.c.bf16 %v422, %v422
    %v557 = vpack.c.bf16 %v424, %v424
    %v558 = vpack.c.bf16 %v539, %v539
    %v559 = vpack.c.bf16 %v541, %v541
    %v560 = vpack.c.bf16 %v545, %v545
    %v561 = vpack.c.bf16 %v547, %v547
    %v562 = vpack.c.bf16 %v551, %v551
    %v563 = vpack.c.bf16 %v553, %v553
    %566 = vrot.lane.b32.xlu0 %v504, 96
    %v567 = vpop.permute.xlu0 %566
    %568 = vrot.lane.b32.xlu0 %v506, 96
    %v569 = vpop.permute.xlu0 %568
    %572 = vrot.lane.b32.xlu0 %v504, 64
    %v573 = vpop.permute.xlu0 %572
    %574 = vrot.lane.b32.xlu0 %v506, 64
    %v575 = vpop.permute.xlu0 %574
    %578 = vrot.lane.b32.xlu0 %v504, 32
    %v579 = vpop.permute.xlu0 %578
    %580 = vrot.lane.b32.xlu0 %v506, 32
    %v581 = vpop.permute.xlu0 %580
    %v584 = vpack.c.bf16 %v504, %v504
    %v585 = vpack.c.bf16 %v506, %v506
    %v586 = vpack.c.bf16 %v567, %v567
    %v587 = vpack.c.bf16 %v569, %v569
    %v588 = vpack.c.bf16 %v573, %v573
    %v589 = vpack.c.bf16 %v575, %v575
    %v590 = vpack.c.bf16 %v579, %v579
    %v591 = vpack.c.bf16 %v581, %v581
    %vm592 = vcmask 261120
    %v594 = vsel %vm592, %v528, 0
    %v597 = vsel %vm592, %v556, 0
    %599 = vmatpush.bf16.xpose.msra.mxu0 0
    %600 = vmatpush.bf16.xpose.msra.mxu0 0
    %601 = vmatpush.bf16.xpose.msra.mxu0 0
    %602 = vmatpush.bf16.xpose.msra.mxu0 0
    %603 = vmatpush.bf16.xpose.msra.mxu0 0
    %604 = vmatpush.bf16.xpose.msra.mxu0 0
    %605 = vmatpush.bf16.xpose.msra.mxu0 0
    %606 = vmatpush.bf16.xpose.msra.mxu0 %v597
    %607 = vmatmul.bf16.gmra.mxu0 %v594
    %v608 = vpop.f32.mrf.mxu0
    %v609 = vadd.f32 0.0, %v608
    %v610 = vpop.f32.mrf.mxu0
    %611 = vdwg.mxu0
    %v613 = vsel %vm592, %v529, 0
    %v616 = vsel %vm592, %v557, 0
    %618 = vmatpush.bf16.xpose.msra.mxu0 0
    %619 = vmatpush.bf16.xpose.msra.mxu0 0
    %620 = vmatpush.bf16.xpose.msra.mxu0 0
    %621 = vmatpush.bf16.xpose.msra.mxu0 0
    %622 = vmatpush.bf16.xpose.msra.mxu0 0
    %623 = vmatpush.bf16.xpose.msra.mxu0 0
    %624 = vmatpush.bf16.xpose.msra.mxu0 0
    %625 = vmatpush.bf16.xpose.msra.mxu0 %v616
    %626 = vmatmul.bf16.gmra.mxu0 %v613
    %v627 = vpop.f32.mrf.mxu0
    %v628 = vadd.f32 0.0, %v627
    %v629 = vpop.f32.mrf.mxu0
    %630 = vdwg.mxu0
    %v632 = vsel %vm592, %v530, 0
    %v635 = vsel %vm592, %v558, 0
    %637 = vmatpush.bf16.xpose.msra.mxu0 0
    %638 = vmatpush.bf16.xpose.msra.mxu0 0
    %639 = vmatpush.bf16.xpose.msra.mxu0 0
    %640 = vmatpush.bf16.xpose.msra.mxu0 0
    %641 = vmatpush.bf16.xpose.msra.mxu0 0
    %642 = vmatpush.bf16.xpose.msra.mxu0 0
    %643 = vmatpush.bf16.xpose.msra.mxu0 0
    %644 = vmatpush.bf16.xpose.msra.mxu0 %v635
    %645 = vmatmul.bf16.gmra.mxu0 %v632
    %v646 = vpop.f32.mrf.mxu0
    %v647 = vadd.f32 0.0, %v646
    %v648 = vpop.f32.mrf.mxu0
    %649 = vdwg.mxu0
    %v651 = vsel %vm592, %v531, 0
    %v654 = vsel %vm592, %v559, 0
    %656 = vmatpush.bf16.xpose.msra.mxu0 0
    %657 = vmatpush.bf16.xpose.msra.mxu0 0
    %658 = vmatpush.bf16.xpose.msra.mxu0 0
    %659 = vmatpush.bf16.xpose.msra.mxu0 0
    %660 = vmatpush.bf16.xpose.msra.mxu0 0
    %661 = vmatpush.bf16.xpose.msra.mxu0 0
    %662 = vmatpush.bf16.xpose.msra.mxu0 0
    %663 = vmatpush.bf16.xpose.msra.mxu0 %v654
    %664 = vmatmul.bf16.gmra.mxu0 %v651
    %v665 = vpop.f32.mrf.mxu0
    %v666 = vadd.f32 0.0, %v665
    %v667 = vpop.f32.mrf.mxu0
    %668 = vdwg.mxu0
    %v670 = vsel %vm592, %v532, 0
    %v673 = vsel %vm592, %v560, 0
    %675 = vmatpush.bf16.xpose.msra.mxu0 0
    %676 = vmatpush.bf16.xpose.msra.mxu0 0
    %677 = vmatpush.bf16.xpose.msra.mxu0 0
    %678 = vmatpush.bf16.xpose.msra.mxu0 0
    %679 = vmatpush.bf16.xpose.msra.mxu0 0
    %680 = vmatpush.bf16.xpose.msra.mxu0 0
    %681 = vmatpush.bf16.xpose.msra.mxu0 0
    %682 = vmatpush.bf16.xpose.msra.mxu0 %v673
    %683 = vmatmul.bf16.gmra.mxu0 %v670
    %v684 = vpop.f32.mrf.mxu0
    %v685 = vadd.f32 0.0, %v684
    %v686 = vpop.f32.mrf.mxu0
    %687 = vdwg.mxu0
    %v689 = vsel %vm592, %v533, 0
    %v692 = vsel %vm592, %v561, 0
    %694 = vmatpush.bf16.xpose.msra.mxu0 0
    %695 = vmatpush.bf16.xpose.msra.mxu0 0
    %696 = vmatpush.bf16.xpose.msra.mxu0 0
    %697 = vmatpush.bf16.xpose.msra.mxu0 0
    %698 = vmatpush.bf16.xpose.msra.mxu0 0
    %699 = vmatpush.bf16.xpose.msra.mxu0 0
    %700 = vmatpush.bf16.xpose.msra.mxu0 0
    %701 = vmatpush.bf16.xpose.msra.mxu0 %v692
    %702 = vmatmul.bf16.gmra.mxu0 %v689
    %v703 = vpop.f32.mrf.mxu0
    %v704 = vadd.f32 0.0, %v703
    %v705 = vpop.f32.mrf.mxu0
    %706 = vdwg.mxu0
    %v708 = vsel %vm592, %v534, 0
    %v711 = vsel %vm592, %v562, 0
    %713 = vmatpush.bf16.xpose.msra.mxu0 0
    %714 = vmatpush.bf16.xpose.msra.mxu0 0
    %715 = vmatpush.bf16.xpose.msra.mxu0 0
    %716 = vmatpush.bf16.xpose.msra.mxu0 0
    %717 = vmatpush.bf16.xpose.msra.mxu0 0
    %718 = vmatpush.bf16.xpose.msra.mxu0 0
    %719 = vmatpush.bf16.xpose.msra.mxu0 0
    %720 = vmatpush.bf16.xpose.msra.mxu0 %v711
    %721 = vmatmul.bf16.gmra.mxu0 %v708
    %v722 = vpop.f32.mrf.mxu0
    %v723 = vadd.f32 0.0, %v722
    %v724 = vpop.f32.mrf.mxu0
    %725 = vdwg.mxu0
    %v727 = vsel %vm592, %v535, 0
    %v730 = vsel %vm592, %v563, 0
    %732 = vmatpush.bf16.xpose.msra.mxu0 0
    %733 = vmatpush.bf16.xpose.msra.mxu0 0
    %734 = vmatpush.bf16.xpose.msra.mxu0 0
    %735 = vmatpush.bf16.xpose.msra.mxu0 0
    %736 = vmatpush.bf16.xpose.msra.mxu0 0
    %737 = vmatpush.bf16.xpose.msra.mxu0 0
    %738 = vmatpush.bf16.xpose.msra.mxu0 0
    %739 = vmatpush.bf16.xpose.msra.mxu0 %v730
    %740 = vmatmul.bf16.gmra.mxu0 %v727
    %v741 = vpop.f32.mrf.mxu0
    %v742 = vadd.f32 0.0, %v741
    %v743 = vpop.f32.mrf.mxu0
    %744 = vdwg.mxu0
    %vm745 = vcmask 64512
    %v746 = vsel %vm745, %v609, -inf
    %747 = vmax.xlane.f32.xlu0 %v746
    %v748 = vpop.xlane.xlu0 %747
    %v749 = vsel %vm745, %v628, -inf
    %750 = vmax.xlane.f32.xlu0 %v749
    %v751 = vpop.xlane.xlu0 %750
    %v752 = vsel %vm745, %v647, -inf
    %753 = vmax.xlane.f32.xlu0 %v752
    %v754 = vpop.xlane.xlu0 %753
    %v755 = vsel %vm745, %v666, -inf
    %756 = vmax.xlane.f32.xlu0 %v755
    %v757 = vpop.xlane.xlu0 %756
    %v758 = vsel %vm745, %v685, -inf
    %759 = vmax.xlane.f32.xlu0 %v758
    %v760 = vpop.xlane.xlu0 %759
    %v761 = vsel %vm745, %v704, -inf
    %762 = vmax.xlane.f32.xlu0 %v761
    %v763 = vpop.xlane.xlu0 %762
    %v764 = vsel %vm745, %v723, -inf
    %765 = vmax.xlane.f32.xlu0 %v764
    %v766 = vpop.xlane.xlu0 %765
    %v767 = vsel %vm745, %v742, -inf
    %768 = vmax.xlane.f32.xlu0 %v767
    %v769 = vpop.xlane.xlu0 %768
    %v770 = vsub.f32 %v609, %v748
    %v771 = vsub.f32 %v628, %v751
    %v772 = vsub.f32 %v647, %v754
    %v773 = vsub.f32 %v666, %v757
    %v774 = vsub.f32 %v685, %v760
    %v775 = vsub.f32 %v704, %v763
    %v776 = vsub.f32 %v723, %v766
    %v777 = vsub.f32 %v742, %v769
    %v778 = vmul.f32 %v770, 1.442695
    %v779 = vpow.pop %v778
    %v780 = vmul.f32 %v771, 1.442695
    %v781 = vpow.pop %v780
    %v782 = vmul.f32 %v772, 1.442695
    %v783 = vpow.pop %v782
    %v784 = vmul.f32 %v773, 1.442695
    %v785 = vpow.pop %v784
    %v786 = vmul.f32 %v774, 1.442695
    %v787 = vpow.pop %v786
    %v788 = vmul.f32 %v775, 1.442695
    %v789 = vpow.pop %v788
    %v790 = vmul.f32 %v776, 1.442695
    %v791 = vpow.pop %v790
    %v792 = vmul.f32 %v777, 1.442695
    %v793 = vpow.pop %v792
    %v794 = vsel %vm745, %v779, 0.0
    %795 = vadd.xlane.f32.xlu0 %v794
    %v796 = vpop.xlane.xlu0 %795
    %v797 = vsel %vm745, %v781, 0.0
    %798 = vadd.xlane.f32.xlu0 %v797
    %v799 = vpop.xlane.xlu0 %798
    %v800 = vsel %vm745, %v783, 0.0
    %801 = vadd.xlane.f32.xlu0 %v800
    %v802 = vpop.xlane.xlu0 %801
    %v803 = vsel %vm745, %v785, 0.0
    %804 = vadd.xlane.f32.xlu0 %v803
    %v805 = vpop.xlane.xlu0 %804
    %v806 = vsel %vm745, %v787, 0.0
    %807 = vadd.xlane.f32.xlu0 %v806
    %v808 = vpop.xlane.xlu0 %807
    %v809 = vsel %vm745, %v789, 0.0
    %810 = vadd.xlane.f32.xlu0 %v809
    %v811 = vpop.xlane.xlu0 %810
    %v812 = vsel %vm745, %v791, 0.0
    %813 = vadd.xlane.f32.xlu0 %v812
    %v814 = vpop.xlane.xlu0 %813
    %v815 = vsel %vm745, %v793, 0.0
    %816 = vadd.xlane.f32.xlu0 %v815
    %v817 = vpop.xlane.xlu0 %816
    %v818 = vrcp.pop %v796
    %v819 = vrcp.pop %v799
    %v820 = vrcp.pop %v802
    %v821 = vrcp.pop %v805
    %v822 = vrcp.pop %v808
    %v823 = vrcp.pop %v811
    %v824 = vrcp.pop %v814
    %v825 = vrcp.pop %v817
    %v826 = vmul.f32 %v779, %v818
    %v827 = vmul.f32 %v781, %v819
    %v828 = vmul.f32 %v783, %v820
    %v829 = vmul.f32 %v785, %v821
    %v830 = vmul.f32 %v787, %v822
    %v831 = vmul.f32 %v789, %v823
    %v832 = vmul.f32 %v791, %v824
    %v833 = vmul.f32 %v793, %v825
    %v834 = vpack.c.bf16 %v826, %v826
    %v835 = vpack.c.bf16 %v827, %v827
    %v836 = vpack.c.bf16 %v828, %v828
    %v837 = vpack.c.bf16 %v829, %v829
    %v838 = vpack.c.bf16 %v830, %v830
    %v839 = vpack.c.bf16 %v831, %v831
    %v840 = vpack.c.bf16 %v832, %v832
    %v841 = vpack.c.bf16 %v833, %v833
    %v843 = vsel %vm745, %v834, 0
    %vm845 = vcmask 1043456
    %v847 = vsel %vm845, %v584, 0
    %849 = vmatpush.bf16.msra.mxu0 0
    %850 = vmatpush.bf16.msra.mxu0 0
    %851 = vmatpush.bf16.msra.mxu0 0
    %852 = vmatpush.bf16.msra.mxu0 0
    %853 = vmatpush.bf16.msra.mxu0 0
    %854 = vmatpush.bf16.msra.mxu0 0
    %855 = vmatpush.bf16.msra.mxu0 0
    %856 = vmatpush.bf16.msra.mxu0 %v847
    %857 = vmatmul.bf16.gmra.mxu0 %v843
    %v858 = vpop.f32.mrf.mxu0
    %v859 = vadd.f32 0.0, %v858
    %v860 = vpop.f32.mrf.mxu0
    %861 = vdwg.mxu0
    %v863 = vsel %vm745, %v835, 0
    %v866 = vsel %vm845, %v585, 0
    %868 = vmatpush.bf16.msra.mxu0 0
    %869 = vmatpush.bf16.msra.mxu0 0
    %870 = vmatpush.bf16.msra.mxu0 0
    %871 = vmatpush.bf16.msra.mxu0 0
    %872 = vmatpush.bf16.msra.mxu0 0
    %873 = vmatpush.bf16.msra.mxu0 0
    %874 = vmatpush.bf16.msra.mxu0 0
    %875 = vmatpush.bf16.msra.mxu0 %v866
    %876 = vmatmul.bf16.gmra.mxu0 %v863
    %v877 = vpop.f32.mrf.mxu0
    %v878 = vadd.f32 0.0, %v877
    %v879 = vpop.f32.mrf.mxu0
    %880 = vdwg.mxu0
    %v882 = vsel %vm745, %v836, 0
    %v885 = vsel %vm845, %v586, 0
    %887 = vmatpush.bf16.msra.mxu0 0
    %888 = vmatpush.bf16.msra.mxu0 0
    %889 = vmatpush.bf16.msra.mxu0 0
    %890 = vmatpush.bf16.msra.mxu0 0
    %891 = vmatpush.bf16.msra.mxu0 0
    %892 = vmatpush.bf16.msra.mxu0 0
    %893 = vmatpush.bf16.msra.mxu0 0
    %894 = vmatpush.bf16.msra.mxu0 %v885
    %895 = vmatmul.bf16.gmra.mxu0 %v882
    %v896 = vpop.f32.mrf.mxu0
    %v897 = vadd.f32 0.0, %v896
    %v898 = vpop.f32.mrf.mxu0
    %899 = vdwg.mxu0
    %v901 = vsel %vm745, %v837, 0
    %v904 = vsel %vm845, %v587, 0
    %906 = vmatpush.bf16.msra.mxu0 0
    %907 = vmatpush.bf16.msra.mxu0 0
    %908 = vmatpush.bf16.msra.mxu0 0
    %909 = vmatpush.bf16.msra.mxu0 0
    %910 = vmatpush.bf16.msra.mxu0 0
    %911 = vmatpush.bf16.msra.mxu0 0
    %912 = vmatpush.bf16.msra.mxu0 0
    %913 = vmatpush.bf16.msra.mxu0 %v904
    %914 = vmatmul.bf16.gmra.mxu0 %v901
    %v915 = vpop.f32.mrf.mxu0
    %v916 = vadd.f32 0.0, %v915
    %v917 = vpop.f32.mrf.mxu0
    %918 = vdwg.mxu0
    %v920 = vsel %vm745, %v838, 0
    %v923 = vsel %vm845, %v588, 0
    %925 = vmatpush.bf16.msra.mxu0 0
    %926 = vmatpush.bf16.msra.mxu0 0
    %927 = vmatpush.bf16.msra.mxu0 0
    %928 = vmatpush.bf16.msra.mxu0 0
    %929 = vmatpush.bf16.msra.mxu0 0
    %930 = vmatpush.bf16.msra.mxu0 0
    %931 = vmatpush.bf16.msra.mxu0 0
    %932 = vmatpush.bf16.msra.mxu0 %v923
    %933 = vmatmul.bf16.gmra.mxu0 %v920
    %v934 = vpop.f32.mrf.mxu0
    %v935 = vadd.f32 0.0, %v934
    %v936 = vpop.f32.mrf.mxu0
    %937 = vdwg.mxu0
    %v939 = vsel %vm745, %v839, 0
    %v942 = vsel %vm845, %v589, 0
    %944 = vmatpush.bf16.msra.mxu0 0
    %945 = vmatpush.bf16.msra.mxu0 0
    %946 = vmatpush.bf16.msra.mxu0 0
    %947 = vmatpush.bf16.msra.mxu0 0
    %948 = vmatpush.bf16.msra.mxu0 0
    %949 = vmatpush.bf16.msra.mxu0 0
    %950 = vmatpush.bf16.msra.mxu0 0
    %951 = vmatpush.bf16.msra.mxu0 %v942
    %952 = vmatmul.bf16.gmra.mxu0 %v939
    %v953 = vpop.f32.mrf.mxu0
    %v954 = vadd.f32 0.0, %v953
    %v955 = vpop.f32.mrf.mxu0
    %956 = vdwg.mxu0
    %v958 = vsel %vm745, %v840, 0
    %v961 = vsel %vm845, %v590, 0
    %963 = vmatpush.bf16.msra.mxu0 0
    %964 = vmatpush.bf16.msra.mxu0 0
    %965 = vmatpush.bf16.msra.mxu0 0
    %966 = vmatpush.bf16.msra.mxu0 0
    %967 = vmatpush.bf16.msra.mxu0 0
    %968 = vmatpush.bf16.msra.mxu0 0
    %969 = vmatpush.bf16.msra.mxu0 0
    %970 = vmatpush.bf16.msra.mxu0 %v961
    %971 = vmatmul.bf16.gmra.mxu0 %v958
    %v972 = vpop.f32.mrf.mxu0
    %v973 = vadd.f32 0.0, %v972
    %v974 = vpop.f32.mrf.mxu0
    %975 = vdwg.mxu0
    %v977 = vsel %vm745, %v841, 0
    %v980 = vsel %vm845, %v591, 0
    %982 = vmatpush.bf16.msra.mxu0 0
    %983 = vmatpush.bf16.msra.mxu0 0
    %984 = vmatpush.bf16.msra.mxu0 0
    %985 = vmatpush.bf16.msra.mxu0 0
    %986 = vmatpush.bf16.msra.mxu0 0
    %987 = vmatpush.bf16.msra.mxu0 0
    %988 = vmatpush.bf16.msra.mxu0 0
    %989 = vmatpush.bf16.msra.mxu0 %v980
    %990 = vmatmul.bf16.gmra.mxu0 %v977
    %v991 = vpop.f32.mrf.mxu0
    %v992 = vadd.f32 0.0, %v991
    %v993 = vpop.f32.mrf.mxu0
    %994 = vdwg.mxu0
    %997 = vrot.lane.b32.xlu0 %v897, 32
    %v998 = vpop.permute.xlu0 %997
    %999 = vrot.lane.b32.xlu0 %v916, 32
    %v1000 = vpop.permute.xlu0 %999
    %1005 = vrot.lane.b32.xlu0 %v935, 64
    %v1006 = vpop.permute.xlu0 %1005
    %1007 = vrot.lane.b32.xlu0 %v954, 64
    %v1008 = vpop.permute.xlu0 %1007
    %1013 = vrot.lane.b32.xlu0 %v973, 96
    %v1014 = vpop.permute.xlu0 %1013
    %1015 = vrot.lane.b32.xlu0 %v992, 96
    %v1016 = vpop.permute.xlu0 %1015
    %v1019 = vsel %vm592, %v859, %v998
    %v1020 = vsel %vm592, %v878, %v1000
    %vm1021 = vcmask 523264
    %v1022 = vsel %vm1021, %v1019, %v1006
    %v1023 = vsel %vm1021, %v1020, %v1008
    %vm1024 = vcmask 785408
    %v1025 = vsel %vm1024, %v1022, %v1014
    %v1026 = vsel %vm1024, %v1023, %v1016
    %v1027 = vpack.c.bf16 %v1026, %v1025
    %v1028 = vld [vmem:[#allocation13] sm:$0xf]
    %v1029 = vld [vmem:[#allocation13 + $0x4] sm:$0xf]
    %v1030 = vld [vmem:[#allocation13 + $0x8] sm:$0xf]
    %v1031 = vld [vmem:[#allocation13 + $0xc] sm:$0xf]
    %v1032 = vld [vmem:[#allocation13 + $0x10] sm:$0xf]
    %v1033 = vld [vmem:[#allocation13 + $0x14] sm:$0xf]
    %v1034 = vld [vmem:[#allocation13 + $0x18] sm:$0xf]
    %v1035 = vld [vmem:[#allocation13 + $0x1c] sm:$0xf]
    %v1036 = vld [vmem:[#allocation13 + $0x20] sm:$0xf]
    %v1037 = vld [vmem:[#allocation13 + $0x24] sm:$0xf]
    %v1038 = vld [vmem:[#allocation13 + $0x28] sm:$0xf]
    %v1039 = vld [vmem:[#allocation13 + $0x2c] sm:$0xf]
    %v1040 = vld [vmem:[#allocation13 + $0x30] sm:$0xf]
    %v1041 = vld [vmem:[#allocation13 + $0x34] sm:$0xf]
    %v1042 = vld [vmem:[#allocation13 + $0x38] sm:$0xf]
    %v1043 = vld [vmem:[#allocation13 + $0x3c] sm:$0xf]
    %v1044 = vld [vmem:[%s11] sm:$0x1]
    %v1046 = vperm.slane %v1044, 0
    %v1064 = vunpack.c.l.b16 %v1028
    %v1065 = vunpack.c.l.b16 %v1029
    %v1066 = vunpack.c.l.b16 %v1030
    %v1067 = vunpack.c.l.b16 %v1031
    %v1068 = vunpack.c.l.b16 %v1032
    %v1069 = vunpack.c.l.b16 %v1033
    %v1070 = vunpack.c.l.b16 %v1034
    %v1071 = vunpack.c.l.b16 %v1035
    %v1072 = vunpack.c.l.b16 %v1036
    %v1073 = vunpack.c.l.b16 %v1037
    %v1074 = vunpack.c.l.b16 %v1038
    %v1075 = vunpack.c.l.b16 %v1039
    %v1076 = vunpack.c.l.b16 %v1040
    %v1077 = vunpack.c.l.b16 %v1041
    %v1078 = vunpack.c.l.b16 %v1042
    %v1079 = vunpack.c.l.b16 %v1043
    %v1080 = vpack.c.b16 %v1065, %v1064
    %v1081 = vpack.c.b16 %v1067, %v1066
    %v1082 = vpack.c.b16 %v1069, %v1068
    %v1083 = vpack.c.b16 %v1071, %v1070
    %v1084 = vpack.c.b16 %v1073, %v1072
    %v1085 = vpack.c.b16 %v1075, %v1074
    %v1086 = vpack.c.b16 %v1077, %v1076
    %v1087 = vpack.c.b16 %v1079, %v1078
    %1096 = vmatpush.bf16.msra.mxu0 %v1087
    %1097 = vmatpush.bf16.msra.mxu0 %v1086
    %1098 = vmatpush.bf16.msra.mxu0 %v1085
    %1099 = vmatpush.bf16.msra.mxu0 %v1084
    %1100 = vmatpush.bf16.msra.mxu0 %v1083
    %1101 = vmatpush.bf16.msra.mxu0 %v1082
    %1102 = vmatpush.bf16.msra.mxu0 %v1081
    %1103 = vmatpush.bf16.msra.mxu0 %v1080
    %1104 = vmatmul.bf16.gmra.mxu0 %v1027
    %v1105 = vpop.f32.mrf.mxu0
    %v1106 = vadd.f32 %v1046, %v1105
    %v1107 = vpop.f32.mrf.mxu0
    %v1108 = vadd.f32 %v1046, %v1107
    %1109 = vdwg.mxu0
    %v1110 = vadd.f32 %v200, %v1106
    %v1111 = vadd.f32 %v201, %v1108
    %v1112 = vld [vmem:[%s12] sm:$0x1]
    %v1113 = vld [vmem:[%s13] sm:$0x1]
    %1114 = vadd.xlane.f32.xlu0 %v1110
    %v1115 = vpop.xlane.xlu0 %1114
    %1116 = vadd.xlane.f32.xlu0 %v1111
    %v1117 = vpop.xlane.xlu0 %1116
    %v1118 = vmul.f32 %v1115, %v214
    %v1119 = vmul.f32 %v1117, %v214
    %v1120 = vsub.f32 %v1110, %v1118
    %v1121 = vsub.f32 %v1111, %v1119
    %v1122 = vmul.f32 %v1120, %v1120
    %v1123 = vmul.f32 %v1121, %v1121
    %1124 = vadd.xlane.f32.xlu0 %v1122
    %v1125 = vpop.xlane.xlu0 %1124
    %1126 = vadd.xlane.f32.xlu0 %v1123
    %v1127 = vpop.xlane.xlu0 %1126
    %v1128 = vmul.f32 %v1125, %v214
    %v1129 = vmul.f32 %v1127, %v214
    %v1130 = vadd.f32 %v1128, 1e-06
    %v1131 = vadd.f32 %v1129, 1e-06
    %v1132 = vrsqrt.pop %v1130
    %v1133 = vmul.f32 %v1132, %v1130
    %v1134 = vmul.f32 %v1133, %v1132
    %v1135 = vmul.f32 0.5, %v1134
    %v1136 = vsub.f32 1.5, %v1135
    %v1137 = vmul.f32 %v1132, %v1136
    %vm1138 = vweird.f32 %v1130
    %vm1139 = vweird.f32 %v1132
    %vm1140 = vmor %vm1138, %vm1139
    %v1141 = vsel %vm1140, %v1132, %v1137
    %v1142 = vrsqrt.pop %v1131
    %v1143 = vmul.f32 %v1142, %v1131
    %v1144 = vmul.f32 %v1143, %v1142
    %v1145 = vmul.f32 0.5, %v1144
    %v1146 = vsub.f32 1.5, %v1145
    %v1147 = vmul.f32 %v1142, %v1146
    %vm1148 = vweird.f32 %v1131
    %vm1149 = vweird.f32 %v1142
    %vm1150 = vmor %vm1148, %vm1149
    %v1151 = vsel %vm1150, %v1142, %v1147
    %v1152 = vmul.f32 %v1120, %v1141
    %v1153 = vmul.f32 %v1121, %v1151
    %v1155 = vperm.slane %v1112, 0
    %v1157 = vmul.f32 %v1152, %v1155
    %v1158 = vmul.f32 %v1153, %v1155
    %v1160 = vperm.slane %v1113, 0
    %v1162 = vadd.f32 %v1157, %v1160
    %v1163 = vadd.f32 %v1158, %v1160
    %v1164 = vpack.c.bf16 %v1163, %v1162
    %v1165 = vld [vmem:[#allocation14] sm:$0xff]
    %v1166 = vld [vmem:[#allocation14 + $0x8] sm:$0xff]
    %v1167 = vld [vmem:[#allocation14 + $0x10] sm:$0xff]
    %v1168 = vld [vmem:[#allocation14 + $0x18] sm:$0xff]
    %v1169 = vld [vmem:[#allocation14 + $0x20] sm:$0xff]
    %v1170 = vld [vmem:[#allocation14 + $0x28] sm:$0xff]
    %v1171 = vld [vmem:[#allocation14 + $0x30] sm:$0xff]
    %v1172 = vld [vmem:[#allocation14 + $0x38] sm:$0xff]
    %v1173 = vld [vmem:[#allocation14 + $0x40] sm:$0xff]
    %v1174 = vld [vmem:[#allocation14 + $0x48] sm:$0xff]
    %v1175 = vld [vmem:[#allocation14 + $0x50] sm:$0xff]
    %v1176 = vld [vmem:[#allocation14 + $0x58] sm:$0xff]
    %v1177 = vld [vmem:[#allocation14 + $0x60] sm:$0xff]
    %v1178 = vld [vmem:[#allocation14 + $0x68] sm:$0xff]
    %v1179 = vld [vmem:[#allocation14 + $0x70] sm:$0xff]
    %v1180 = vld [vmem:[#allocation14 + $0x78] sm:$0xff]
    %v1181 = vld [vmem:[#allocation14 + $0x80] sm:$0xff]
    %v1182 = vld [vmem:[#allocation14 + $0x88] sm:$0xff]
    %v1183 = vld [vmem:[#allocation14 + $0x90] sm:$0xff]
    %v1184 = vld [vmem:[#allocation14 + $0x98] sm:$0xff]
    %v1185 = vld [vmem:[#allocation14 + $0xa0] sm:$0xff]
    %v1186 = vld [vmem:[#allocation14 + $0xa8] sm:$0xff]
    %v1187 = vld [vmem:[#allocation14 + $0xb0] sm:$0xff]
    %v1188 = vld [vmem:[#allocation14 + $0xb8] sm:$0xff]
    %v1189 = vld [vmem:[#allocation14 + $0xc0] sm:$0xff]
    %v1190 = vld [vmem:[#allocation14 + $0xc8] sm:$0xff]
    %v1191 = vld [vmem:[#allocation14 + $0xd0] sm:$0xff]
    %v1192 = vld [vmem:[#allocation14 + $0xd8] sm:$0xff]
    %v1193 = vld [vmem:[#allocation14 + $0xe0] sm:$0xff]
    %v1194 = vld [vmem:[#allocation14 + $0xe8] sm:$0xff]
    %v1195 = vld [vmem:[#allocation14 + $0xf0] sm:$0xff]
    %v1196 = vld [vmem:[#allocation14 + $0xf8] sm:$0xff]
    %v1197 = vld [vmem:[%s15] sm:$0xf]
    %v1199 = vperm.slane %v1197, 0
    %v1200 = vperm.slane %v1197, 1
    %v1201 = vperm.slane %v1197, 2
    %v1202 = vperm.slane %v1197, 3
    %v1239 = vunpack.c.l.b16 %v1165
    %v1240 = vunpack.c.h.b16 %v1165
    %v1241 = vunpack.c.l.b16 %v1166
    %v1242 = vunpack.c.h.b16 %v1166
    %v1243 = vunpack.c.l.b16 %v1167
    %v1244 = vunpack.c.h.b16 %v1167
    %v1245 = vunpack.c.l.b16 %v1168
    %v1246 = vunpack.c.h.b16 %v1168
    %v1247 = vunpack.c.l.b16 %v1169
    %v1248 = vunpack.c.h.b16 %v1169
    %v1249 = vunpack.c.l.b16 %v1170
    %v1250 = vunpack.c.h.b16 %v1170
    %v1251 = vunpack.c.l.b16 %v1171
    %v1252 = vunpack.c.h.b16 %v1171
    %v1253 = vunpack.c.l.b16 %v1172
    %v1254 = vunpack.c.h.b16 %v1172
    %v1255 = vunpack.c.l.b16 %v1173
    %v1256 = vunpack.c.h.b16 %v1173
    %v1257 = vunpack.c.l.b16 %v1174
    %v1258 = vunpack.c.h.b16 %v1174
    %v1259 = vunpack.c.l.b16 %v1175
    %v1260 = vunpack.c.h.b16 %v1175
    %v1261 = vunpack.c.l.b16 %v1176
    %v1262 = vunpack.c.h.b16 %v1176
    %v1263 = vunpack.c.l.b16 %v1177
    %v1264 = vunpack.c.h.b16 %v1177
    %v1265 = vunpack.c.l.b16 %v1178
    %v1266 = vunpack.c.h.b16 %v1178
    %v1267 = vunpack.c.l.b16 %v1179
    %v1268 = vunpack.c.h.b16 %v1179
    %v1269 = vunpack.c.l.b16 %v1180
    %v1270 = vunpack.c.h.b16 %v1180
    %v1271 = vunpack.c.l.b16 %v1181
    %v1272 = vunpack.c.h.b16 %v1181
    %v1273 = vunpack.c.l.b16 %v1182
    %v1274 = vunpack.c.h.b16 %v1182
    %v1275 = vunpack.c.l.b16 %v1183
    %v1276 = vunpack.c.h.b16 %v1183
    %v1277 = vunpack.c.l.b16 %v1184
    %v1278 = vunpack.c.h.b16 %v1184
    %v1279 = vunpack.c.l.b16 %v1185
    %v1280 = vunpack.c.h.b16 %v1185
    %v1281 = vunpack.c.l.b16 %v1186
    %v1282 = vunpack.c.h.b16 %v1186
    %v1283 = vunpack.c.l.b16 %v1187
    %v1284 = vunpack.c.h.b16 %v1187
    %v1285 = vunpack.c.l.b16 %v1188
    %v1286 = vunpack.c.h.b16 %v1188
    %v1287 = vunpack.c.l.b16 %v1189
    %v1288 = vunpack.c.h.b16 %v1189
    %v1289 = vunpack.c.l.b16 %v1190
    %v1290 = vunpack.c.h.b16 %v1190
    %v1291 = vunpack.c.l.b16 %v1191
    %v1292 = vunpack.c.h.b16 %v1191
    %v1293 = vunpack.c.l.b16 %v1192
    %v1294 = vunpack.c.h.b16 %v1192
    %v1295 = vunpack.c.l.b16 %v1193
    %v1296 = vunpack.c.h.b16 %v1193
    %v1297 = vunpack.c.l.b16 %v1194
    %v1298 = vunpack.c.h.b16 %v1194
    %v1299 = vunpack.c.l.b16 %v1195
    %v1300 = vunpack.c.h.b16 %v1195
    %v1301 = vunpack.c.l.b16 %v1196
    %v1302 = vunpack.c.h.b16 %v1196
    %v1303 = vpack.c.b16 %v1243, %v1239
    %v1304 = vpack.c.b16 %v1244, %v1240
    %v1305 = vpack.c.b16 %v1245, %v1241
    %v1306 = vpack.c.b16 %v1246, %v1242
    %v1307 = vpack.c.b16 %v1251, %v1247
    %v1308 = vpack.c.b16 %v1252, %v1248
    %v1309 = vpack.c.b16 %v1253, %v1249
    %v1310 = vpack.c.b16 %v1254, %v1250
    %v1311 = vpack.c.b16 %v1259, %v1255
    %v1312 = vpack.c.b16 %v1260, %v1256
    %v1313 = vpack.c.b16 %v1261, %v1257
    %v1314 = vpack.c.b16 %v1262, %v1258
    %v1315 = vpack.c.b16 %v1267, %v1263
    %v1316 = vpack.c.b16 %v1268, %v1264
    %v1317 = vpack.c.b16 %v1269, %v1265
    %v1318 = vpack.c.b16 %v1270, %v1266
    %v1319 = vpack.c.b16 %v1275, %v1271
    %v1320 = vpack.c.b16 %v1276, %v1272
    %v1321 = vpack.c.b16 %v1277, %v1273
    %v1322 = vpack.c.b16 %v1278, %v1274
    %v1323 = vpack.c.b16 %v1283, %v1279
    %v1324 = vpack.c.b16 %v1284, %v1280
    %v1325 = vpack.c.b16 %v1285, %v1281
    %v1326 = vpack.c.b16 %v1286, %v1282
    %v1327 = vpack.c.b16 %v1291, %v1287
    %v1328 = vpack.c.b16 %v1292, %v1288
    %v1329 = vpack.c.b16 %v1293, %v1289
    %v1330 = vpack.c.b16 %v1294, %v1290
    %v1331 = vpack.c.b16 %v1299, %v1295
    %v1332 = vpack.c.b16 %v1300, %v1296
    %v1333 = vpack.c.b16 %v1301, %v1297
    %v1334 = vpack.c.b16 %v1302, %v1298
    %1367 = vmatpush.bf16.msra.mxu0 %v1331
    %1368 = vmatpush.bf16.msra.mxu0 %v1327
    %1369 = vmatpush.bf16.msra.mxu0 %v1323
    %1370 = vmatpush.bf16.msra.mxu0 %v1319
    %1371 = vmatpush.bf16.msra.mxu0 %v1315
    %1372 = vmatpush.bf16.msra.mxu0 %v1311
    %1373 = vmatpush.bf16.msra.mxu0 %v1307
    %1374 = vmatpush.bf16.msra.mxu0 %v1303
    %1375 = vmatmul.bf16.gmra.mxu0 %v1164
    %v1376 = vpop.f32.mrf.mxu0
    %v1377 = vadd.f32 %v1199, %v1376
    %v1378 = vpop.f32.mrf.mxu0
    %v1379 = vadd.f32 %v1199, %v1378
    %1380 = vdwg.mxu0
    %1381 = vmatpush.bf16.msra.mxu0 %v1332
    %1382 = vmatpush.bf16.msra.mxu0 %v1328
    %1383 = vmatpush.bf16.msra.mxu0 %v1324
    %1384 = vmatpush.bf16.msra.mxu0 %v1320
    %1385 = vmatpush.bf16.msra.mxu0 %v1316
    %1386 = vmatpush.bf16.msra.mxu0 %v1312
    %1387 = vmatpush.bf16.msra.mxu0 %v1308
    %1388 = vmatpush.bf16.msra.mxu0 %v1304
    %1389 = vmatmul.bf16.gmra.mxu0 %v1164
    %v1390 = vpop.f32.mrf.mxu0
    %v1391 = vadd.f32 %v1200, %v1390
    %v1392 = vpop.f32.mrf.mxu0
    %v1393 = vadd.f32 %v1200, %v1392
    %1394 = vdwg.mxu0
    %1395 = vmatpush.bf16.msra.mxu0 %v1333
    %1396 = vmatpush.bf16.msra.mxu0 %v1329
    %1397 = vmatpush.bf16.msra.mxu0 %v1325
    %1398 = vmatpush.bf16.msra.mxu0 %v1321
    %1399 = vmatpush.bf16.msra.mxu0 %v1317
    %1400 = vmatpush.bf16.msra.mxu0 %v1313
    %1401 = vmatpush.bf16.msra.mxu0 %v1309
    %1402 = vmatpush.bf16.msra.mxu0 %v1305
    %1403 = vmatmul.bf16.gmra.mxu0 %v1164
    %v1404 = vpop.f32.mrf.mxu0
    %v1405 = vadd.f32 %v1201, %v1404
    %v1406 = vpop.f32.mrf.mxu0
    %v1407 = vadd.f32 %v1201, %v1406
    %1408 = vdwg.mxu0
    %1409 = vmatpush.bf16.msra.mxu0 %v1334
    %1410 = vmatpush.bf16.msra.mxu0 %v1330
    %1411 = vmatpush.bf16.msra.mxu0 %v1326
    %1412 = vmatpush.bf16.msra.mxu0 %v1322
    %1413 = vmatpush.bf16.msra.mxu0 %v1318
    %1414 = vmatpush.bf16.msra.mxu0 %v1314
    %1415 = vmatpush.bf16.msra.mxu0 %v1310
    %1416 = vmatpush.bf16.msra.mxu0 %v1306
    %1417 = vmatmul.bf16.gmra.mxu0 %v1164
    %v1418 = vpop.f32.mrf.mxu0
    %v1419 = vadd.f32 %v1202, %v1418
    %v1420 = vpop.f32.mrf.mxu0
    %v1421 = vadd.f32 %v1202, %v1420
    %1422 = vdwg.mxu0
    %v1423 = vmul.f32 %v1377, %v1377
    %v1424 = vmul.f32 %v1391, %v1391
    %v1425 = vmul.f32 %v1405, %v1405
    %v1426 = vmul.f32 %v1419, %v1419
    %v1427 = vmul.f32 %v1379, %v1379
    %v1428 = vmul.f32 %v1393, %v1393
    %v1429 = vmul.f32 %v1407, %v1407
    %v1430 = vmul.f32 %v1421, %v1421
    %v1431 = vmul.f32 %v1377, %v1423
    %v1432 = vmul.f32 %v1391, %v1424
    %v1433 = vmul.f32 %v1405, %v1425
    %v1434 = vmul.f32 %v1419, %v1426
    %v1435 = vmul.f32 %v1379, %v1427
    %v1436 = vmul.f32 %v1393, %v1428
    %v1437 = vmul.f32 %v1407, %v1429
    %v1438 = vmul.f32 %v1421, %v1430
    %v1439 = vmul.f32 %v1431, 0.044715
    %v1440 = vmul.f32 %v1432, 0.044715
    %v1441 = vmul.f32 %v1433, 0.044715
    %v1442 = vmul.f32 %v1434, 0.044715
    %v1443 = vmul.f32 %v1435, 0.044715
    %v1444 = vmul.f32 %v1436, 0.044715
    %v1445 = vmul.f32 %v1437, 0.044715
    %v1446 = vmul.f32 %v1438, 0.044715
    %v1447 = vadd.f32 %v1377, %v1439
    %v1448 = vadd.f32 %v1391, %v1440
    %v1449 = vadd.f32 %v1405, %v1441
    %v1450 = vadd.f32 %v1419, %v1442
    %v1451 = vadd.f32 %v1379, %v1443
    %v1452 = vadd.f32 %v1393, %v1444
    %v1453 = vadd.f32 %v1407, %v1445
    %v1454 = vadd.f32 %v1421, %v1446
    %v1455 = vmul.f32 %v1447, 0.7978846
    %v1456 = vmul.f32 %v1448, 0.7978846
    %v1457 = vmul.f32 %v1449, 0.7978846
    %v1458 = vmul.f32 %v1450, 0.7978846
    %v1459 = vmul.f32 %v1451, 0.7978846
    %v1460 = vmul.f32 %v1452, 0.7978846
    %v1461 = vmul.f32 %v1453, 0.7978846
    %v1462 = vmul.f32 %v1454, 0.7978846
    %v1463 = vtanh.pop %v1455
    %v1464 = vtanh.pop %v1456
    %v1465 = vtanh.pop %v1457
    %v1466 = vtanh.pop %v1458
    %v1467 = vtanh.pop %v1459
    %v1468 = vtanh.pop %v1460
    %v1469 = vtanh.pop %v1461
    %v1470 = vtanh.pop %v1462
    %v1471 = vadd.f32 %v1463, 1.0
    %v1472 = vadd.f32 %v1464, 1.0
    %v1473 = vadd.f32 %v1465, 1.0
    %v1474 = vadd.f32 %v1466, 1.0
    %v1475 = vadd.f32 %v1467, 1.0
    %v1476 = vadd.f32 %v1468, 1.0
    %v1477 = vadd.f32 %v1469, 1.0
    %v1478 = vadd.f32 %v1470, 1.0
    %v1479 = vmul.f32 %v1471, 0.5
    %v1480 = vmul.f32 %v1472, 0.5
    %v1481 = vmul.f32 %v1473, 0.5
    %v1482 = vmul.f32 %v1474, 0.5
    %v1483 = vmul.f32 %v1475, 0.5
    %v1484 = vmul.f32 %v1476, 0.5
    %v1485 = vmul.f32 %v1477, 0.5
    %v1486 = vmul.f32 %v1478, 0.5
    %v1487 = vmul.f32 %v1377, %v1479
    %v1488 = vmul.f32 %v1391, %v1480
    %v1489 = vmul.f32 %v1405, %v1481
    %v1490 = vmul.f32 %v1419, %v1482
    %v1491 = vmul.f32 %v1379, %v1483
    %v1492 = vmul.f32 %v1393, %v1484
    %v1493 = vmul.f32 %v1407, %v1485
    %v1494 = vmul.f32 %v1421, %v1486
    %v1495 = vpack.c.bf16 %v1491, %v1487
    %v1496 = vpack.c.bf16 %v1492, %v1488
    %v1497 = vpack.c.bf16 %v1493, %v1489
    %v1498 = vpack.c.bf16 %v1494, %v1490
    %v1499 = vld [vmem:[#allocation16] sm:$0xf]
    %v1500 = vld [vmem:[#allocation16 + $0x4] sm:$0xf]
    %v1501 = vld [vmem:[#allocation16 + $0x8] sm:$0xf]
    %v1502 = vld [vmem:[#allocation16 + $0xc] sm:$0xf]
    %v1503 = vld [vmem:[#allocation16 + $0x10] sm:$0xf]
    %v1504 = vld [vmem:[#allocation16 + $0x14] sm:$0xf]
    %v1505 = vld [vmem:[#allocation16 + $0x18] sm:$0xf]
    %v1506 = vld [vmem:[#allocation16 + $0x1c] sm:$0xf]
    %v1507 = vld [vmem:[#allocation16 + $0x20] sm:$0xf]
    %v1508 = vld [vmem:[#allocation16 + $0x24] sm:$0xf]
    %v1509 = vld [vmem:[#allocation16 + $0x28] sm:$0xf]
    %v1510 = vld [vmem:[#allocation16 + $0x2c] sm:$0xf]
    %v1511 = vld [vmem:[#allocation16 + $0x30] sm:$0xf]
    %v1512 = vld [vmem:[#allocation16 + $0x34] sm:$0xf]
    %v1513 = vld [vmem:[#allocation16 + $0x38] sm:$0xf]
    %v1514 = vld [vmem:[#allocation16 + $0x3c] sm:$0xf]
    %v1515 = vld [vmem:[#allocation16 + $0x40] sm:$0xf]
    %v1516 = vld [vmem:[#allocation16 + $0x44] sm:$0xf]
    %v1517 = vld [vmem:[#allocation16 + $0x48] sm:$0xf]
    %v1518 = vld [vmem:[#allocation16 + $0x4c] sm:$0xf]
    %v1519 = vld [vmem:[#allocation16 + $0x50] sm:$0xf]
    %v1520 = vld [vmem:[#allocation16 + $0x54] sm:$0xf]
    %v1521 = vld [vmem:[#allocation16 + $0x58] sm:$0xf]
    %v1522 = vld [vmem:[#allocation16 + $0x5c] sm:$0xf]
    %v1523 = vld [vmem:[#allocation16 + $0x60] sm:$0xf]
    %v1524 = vld [vmem:[#allocation16 + $0x64] sm:$0xf]
    %v1525 = vld [vmem:[#allocation16 + $0x68] sm:$0xf]
    %v1526 = vld [vmem:[#allocation16 + $0x6c] sm:$0xf]
    %v1527 = vld [vmem:[#allocation16 + $0x70] sm:$0xf]
    %v1528 = vld [vmem:[#allocation16 + $0x74] sm:$0xf]
    %v1529 = vld [vmem:[#allocation16 + $0x78] sm:$0xf]
    %v1530 = vld [vmem:[#allocation16 + $0x7c] sm:$0xf]
    %v1531 = vld [vmem:[#allocation16 + $0x80] sm:$0xf]
    %v1532 = vld [vmem:[#allocation16 + $0x84] sm:$0xf]
    %v1533 = vld [vmem:[#allocation16 + $0x88] sm:$0xf]
    %v1534 = vld [vmem:[#allocation16 + $0x8c] sm:$0xf]
    %v1535 = vld [vmem:[#allocation16 + $0x90] sm:$0xf]
    %v1536 = vld [vmem:[#allocation16 + $0x94] sm:$0xf]
    %v1537 = vld [vmem:[#allocation16 + $0x98] sm:$0xf]
    %v1538 = vld [vmem:[#allocation16 + $0x9c] sm:$0xf]
    %v1539 = vld [vmem:[#allocation16 + $0xa0] sm:$0xf]
    %v1540 = vld [vmem:[#allocation16 + $0xa4] sm:$0xf]
    %v1541 = vld [vmem:[#allocation16 + $0xa8] sm:$0xf]
    %v1542 = vld [vmem:[#allocation16 + $0xac] sm:$0xf]
    %v1543 = vld [vmem:[#allocation16 + $0xb0] sm:$0xf]
    %v1544 = vld [vmem:[#allocation16 + $0xb4] sm:$0xf]
    %v1545 = vld [vmem:[#allocation16 + $0xb8] sm:$0xf]
    %v1546 = vld [vmem:[#allocation16 + $0xbc] sm:$0xf]
    %v1547 = vld [vmem:[#allocation16 + $0xc0] sm:$0xf]
    %v1548 = vld [vmem:[#allocation16 + $0xc4] sm:$0xf]
    %v1549 = vld [vmem:[#allocation16 + $0xc8] sm:$0xf]
    %v1550 = vld [vmem:[#allocation16 + $0xcc] sm:$0xf]
    %v1551 = vld [vmem:[#allocation16 + $0xd0] sm:$0xf]
    %v1552 = vld [vmem:[#allocation16 + $0xd4] sm:$0xf]
    %v1553 = vld [vmem:[#allocation16 + $0xd8] sm:$0xf]
    %v1554 = vld [vmem:[#allocation16 + $0xdc] sm:$0xf]
    %v1555 = vld [vmem:[#allocation16 + $0xe0] sm:$0xf]
    %v1556 = vld [vmem:[#allocation16 + $0xe4] sm:$0xf]
    %v1557 = vld [vmem:[#allocation16 + $0xe8] sm:$0xf]
    %v1558 = vld [vmem:[#allocation16 + $0xec] sm:$0xf]
    %v1559 = vld [vmem:[#allocation16 + $0xf0] sm:$0xf]
    %v1560 = vld [vmem:[#allocation16 + $0xf4] sm:$0xf]
    %v1561 = vld [vmem:[#allocation16 + $0xf8] sm:$0xf]
    %v1562 = vld [vmem:[#allocation16 + $0xfc] sm:$0xf]
    %v1563 = vld [vmem:[%s17] sm:$0x1]
    %v1565 = vperm.slane %v1563, 0
    %v1631 = vunpack.c.l.b16 %v1499
    %v1632 = vunpack.c.l.b16 %v1500
    %v1633 = vunpack.c.l.b16 %v1501
    %v1634 = vunpack.c.l.b16 %v1502
    %v1635 = vunpack.c.l.b16 %v1503
    %v1636 = vunpack.c.l.b16 %v1504
    %v1637 = vunpack.c.l.b16 %v1505
    %v1638 = vunpack.c.l.b16 %v1506
    %v1639 = vunpack.c.l.b16 %v1507
    %v1640 = vunpack.c.l.b16 %v1508
    %v1641 = vunpack.c.l.b16 %v1509
    %v1642 = vunpack.c.l.b16 %v1510
    %v1643 = vunpack.c.l.b16 %v1511
    %v1644 = vunpack.c.l.b16 %v1512
    %v1645 = vunpack.c.l.b16 %v1513
    %v1646 = vunpack.c.l.b16 %v1514
    %v1647 = vunpack.c.l.b16 %v1515
    %v1648 = vunpack.c.l.b16 %v1516
    %v1649 = vunpack.c.l.b16 %v1517
    %v1650 = vunpack.c.l.b16 %v1518
    %v1651 = vunpack.c.l.b16 %v1519
    %v1652 = vunpack.c.l.b16 %v1520
    %v1653 = vunpack.c.l.b16 %v1521
    %v1654 = vunpack.c.l.b16 %v1522
    %v1655 = vunpack.c.l.b16 %v1523
    %v1656 = vunpack.c.l.b16 %v1524
    %v1657 = vunpack.c.l.b16 %v1525
    %v1658 = vunpack.c.l.b16 %v1526
    %v1659 = vunpack.c.l.b16 %v1527
    %v1660 = vunpack.c.l.b16 %v1528
    %v1661 = vunpack.c.l.b16 %v1529
    %v1662 = vunpack.c.l.b16 %v1530
    %v1663 = vunpack.c.l.b16 %v1531
    %v1664 = vunpack.c.l.b16 %v1532
    %v1665 = vunpack.c.l.b16 %v1533
    %v1666 = vunpack.c.l.b16 %v1534
    %v1667 = vunpack.c.l.b16 %v1535
    %v1668 = vunpack.c.l.b16 %v1536
    %v1669 = vunpack.c.l.b16 %v1537
    %v1670 = vunpack.c.l.b16 %v1538
    %v1671 = vunpack.c.l.b16 %v1539
    %v1672 = vunpack.c.l.b16 %v1540
    %v1673 = vunpack.c.l.b16 %v1541
    %v1674 = vunpack.c.l.b16 %v1542
    %v1675 = vunpack.c.l.b16 %v1543
    %v1676 = vunpack.c.l.b16 %v1544
    %v1677 = vunpack.c.l.b16 %v1545
    %v1678 = vunpack.c.l.b16 %v1546
    %v1679 = vunpack.c.l.b16 %v1547
    %v1680 = vunpack.c.l.b16 %v1548
    %v1681 = vunpack.c.l.b16 %v1549
    %v1682 = vunpack.c.l.b16 %v1550
    %v1683 = vunpack.c.l.b16 %v1551
    %v1684 = vunpack.c.l.b16 %v1552
    %v1685 = vunpack.c.l.b16 %v1553
    %v1686 = vunpack.c.l.b16 %v1554
    %v1687 = vunpack.c.l.b16 %v1555
    %v1688 = vunpack.c.l.b16 %v1556
    %v1689 = vunpack.c.l.b16 %v1557
    %v1690 = vunpack.c.l.b16 %v1558
    %v1691 = vunpack.c.l.b16 %v1559
    %v1692 = vunpack.c.l.b16 %v1560
    %v1693 = vunpack.c.l.b16 %v1561
    %v1694 = vunpack.c.l.b16 %v1562
    %v1695 = vpack.c.b16 %v1632, %v1631
    %v1696 = vpack.c.b16 %v1634, %v1633
    %v1697 = vpack.c.b16 %v1636, %v1635
    %v1698 = vpack.c.b16 %v1638, %v1637
    %v1699 = vpack.c.b16 %v1640, %v1639
    %v1700 = vpack.c.b16 %v1642, %v1641
    %v1701 = vpack.c.b16 %v1644, %v1643
    %v1702 = vpack.c.b16 %v1646, %v1645
    %v1703 = vpack.c.b16 %v1648, %v1647
    %v1704 = vpack.c.b16 %v1650, %v1649
    %v1705 = vpack.c.b16 %v1652, %v1651
    %v1706 = vpack.c.b16 %v1654, %v1653
    %v1707 = vpack.c.b16 %v1656, %v1655
    %v1708 = vpack.c.b16 %v1658, %v1657
    %v1709 = vpack.c.b16 %v1660, %v1659
    %v1710 = vpack.c.b16 %v1662, %v1661
    %v1711 = vpack.c.b16 %v1664, %v1663
    %v1712 = vpack.c.b16 %v1666, %v1665
    %v1713 = vpack.c.b16 %v1668, %v1667
    %v1714 = vpack.c.b16 %v1670, %v1669
    %v1715 = vpack.c.b16 %v1672, %v1671
    %v1716 = vpack.c.b16 %v1674, %v1673
    %v1717 = vpack.c.b16 %v1676, %v1675
    %v1718 = vpack.c.b16 %v1678, %v1677
    %v1719 = vpack.c.b16 %v1680, %v1679
    %v1720 = vpack.c.b16 %v1682, %v1681
    %v1721 = vpack.c.b16 %v1684, %v1683
    %v1722 = vpack.c.b16 %v1686, %v1685
    %v1723 = vpack.c.b16 %v1688, %v1687
    %v1724 = vpack.c.b16 %v1690, %v1689
    %v1725 = vpack.c.b16 %v1692, %v1691
    %v1726 = vpack.c.b16 %v1694, %v1693
    %1759 = vmatpush.bf16.msra.mxu0 %v1702
    %1760 = vmatpush.bf16.msra.mxu0 %v1701
    %1761 = vmatpush.bf16.msra.mxu0 %v1700
    %1762 = vmatpush.bf16.msra.mxu0 %v1699
    %1763 = vmatpush.bf16.msra.mxu0 %v1698
    %1764 = vmatpush.bf16.msra.mxu0 %v1697
    %1765 = vmatpush.bf16.msra.mxu0 %v1696
    %1766 = vmatpush.bf16.msra.mxu0 %v1695
    %1767 = vmatmul.bf16.gmra.mxu0 %v1495
    %v1768 = vpop.f32.mrf.mxu0
    %v1769 = vadd.f32 %v1565, %v1768
    %v1770 = vpop.f32.mrf.mxu0
    %v1771 = vadd.f32 %v1565, %v1770
    %1772 = vdwg.mxu0
    %1773 = vmatpush.bf16.msra.mxu0 %v1710
    %1774 = vmatpush.bf16.msra.mxu0 %v1709
    %1775 = vmatpush.bf16.msra.mxu0 %v1708
    %1776 = vmatpush.bf16.msra.mxu0 %v1707
    %1777 = vmatpush.bf16.msra.mxu0 %v1706
    %1778 = vmatpush.bf16.msra.mxu0 %v1705
    %1779 = vmatpush.bf16.msra.mxu0 %v1704
    %1780 = vmatpush.bf16.msra.mxu0 %v1703
    %1781 = vmatmul.bf16.gmra.mxu0 %v1496
    %v1782 = vpop.f32.mrf.mxu0
    %v1783 = vadd.f32 %v1769, %v1782
    %v1784 = vpop.f32.mrf.mxu0
    %v1785 = vadd.f32 %v1771, %v1784
    %1786 = vdwg.mxu0
    %1787 = vmatpush.bf16.msra.mxu0 %v1718
    %1788 = vmatpush.bf16.msra.mxu0 %v1717
    %1789 = vmatpush.bf16.msra.mxu0 %v1716
    %1790 = vmatpush.bf16.msra.mxu0 %v1715
    %1791 = vmatpush.bf16.msra.mxu0 %v1714
    %1792 = vmatpush.bf16.msra.mxu0 %v1713
    %1793 = vmatpush.bf16.msra.mxu0 %v1712
    %1794 = vmatpush.bf16.msra.mxu0 %v1711
    %1795 = vmatmul.bf16.gmra.mxu0 %v1497
    %v1796 = vpop.f32.mrf.mxu0
    %v1797 = vadd.f32 %v1783, %v1796
    %v1798 = vpop.f32.mrf.mxu0
    %v1799 = vadd.f32 %v1785, %v1798
    %1800 = vdwg.mxu0
    %1801 = vmatpush.bf16.msra.mxu0 %v1726
    %1802 = vmatpush.bf16.msra.mxu0 %v1725
    %1803 = vmatpush.bf16.msra.mxu0 %v1724
    %1804 = vmatpush.bf16.msra.mxu0 %v1723
    %1805 = vmatpush.bf16.msra.mxu0 %v1722
    %1806 = vmatpush.bf16.msra.mxu0 %v1721
    %1807 = vmatpush.bf16.msra.mxu0 %v1720
    %1808 = vmatpush.bf16.msra.mxu0 %v1719
    %1809 = vmatmul.bf16.gmra.mxu0 %v1498
    %v1810 = vpop.f32.mrf.mxu0
    %v1811 = vadd.f32 %v1797, %v1810
    %v1812 = vpop.f32.mrf.mxu0
    %v1813 = vadd.f32 %v1799, %v1812
    %1814 = vdwg.mxu0
    %v1815 = vadd.f32 %v1110, %v1811
    %v1816 = vadd.f32 %v1111, %v1813
    %v1817 = vpack.c.bf16 %v1815, %v1815
    %v1818 = vpack.c.bf16 %v1816, %v1816
    %1819 = vst [vmem:[#allocation17] sm:$0xf] %v1817
    %1820 = vst [vmem:[#allocation17 + $0x4] sm:$0xf] %v1818
    // Predicated region
    $region110: #{tpu_custom_call.1} parent=1 // pred_check
      _
    $region111: #{tpu_custom_call.1} parent=1 // pred_check_branch
      %1822 = sbr.rel (0) target = $region113
    $region112: #{tpu_custom_call.1} parent=1 // pred_region
      %1824 = vsyncadd [#allocation4], 0
      %s1825 = sshll.u32 [#allocation17], 4
      %s1826 = int_to_ptr.vmem [resolvable:$true] %s1825
      %s1827 = sshll.u32 %s18, 4
      %s1828 = int_to_ptr.hbm [resolvable:$true] %s1827
      %1833 = dma.vmem_to_hbm [thread:$0]  %s1826, 128, %s1828, [#allocation4], 64, 64, 4
    $region113: #{tpu_custom_call.1} parent=1 // pred_fallthru
      _
    // Predicated region
    $region114: #{tpu_custom_call.1} parent=1 // pred_check
      _
    $region115: #{tpu_custom_call.1} parent=1 // pred_check_branch
      %1835 = sbr.rel (0) target = $region117
    $region116: #{tpu_custom_call.1} parent=1 // pred_region
      %1837 = dma.done [#allocation4], 128
    $region117: #{tpu_custom_call.1} parent=1 // pred_fallthru
      _
    %1838 = vsyncpa [#allocation3], 1
    %1839 = vsyncpa [#allocation6], 1
    %1840 = vsyncpa [#allocation9], 1
    %1841 = vsyncpa [#allocation12], 1
    %1842 = vsyncpa [#allocation15], 1
    %1843 = vsyncpa [#allocation4], 1

</llo_original>
